<compile_context>
chip_gen: v6e
topology: v6e:2x2x1
jax: 0.10.0
libtpu: 0.0.40
codegen_flags: <defaults>
</compile_context>

<pallas_src>
import jax
import jax.numpy as jnp
from jax.experimental import pallas as pl
from jax.experimental.pallas import tpu as pltpu


def lstm_fc_softmax_kernel(tok_ref, proj_ref, whh_ref, wfc_ref, bfc_ref, out_ref):
    """Token gather + LSTM recurrence + Linear + softmax on one TensorCore.

    tok_ref : [B, T]        int32 tokens (SMEM, scalar-prefetched)
    proj_ref: [VOCAB, 4*HP] emb @ W_ih + b, lane-padded per gate (f32, VMEM)
    whh_ref : [HP, 4*HP]    hidden->gates weights, lane/row padded (bf16)
    wfc_ref : [HP, O]       classifier weights, row padded (bf16)
    bfc_ref : [1, O]        classifier bias (f32)
    out_ref : [B, O]        softmax probabilities (f32)
    """
    B, T = tok_ref.shape
    HP = whh_ref.shape[0]              # padded hidden per gate (128)

    whh = whh_ref[...]                 # loaded once, stays in vregs

    h = jnp.zeros((B, HP), jnp.float32)
    c = jnp.zeros((B, HP), jnp.float32)

    # T is static and tiny -> fully unrolled Python loop; token-row gathers have
    # no dependence on h/c, so the scheduler can hoist them off the serial chain.
    for t in range(T):
        rows = [proj_ref[pl.ds(tok_ref[b, t], 1), :] for b in range(B)]
        xg = jnp.concatenate(rows, axis=0) if B > 1 else rows[0]       # [B, 4*HP]

        gates = xg + jnp.dot(h.astype(whh.dtype), whh,
                             preferred_element_type=jnp.float32)        # [B, 4*HP]

        # 128-lane-aligned gate blocks -> whole-vreg slices, no masked relayout.
        i_g = jax.nn.sigmoid(gates[:, 0 * HP:1 * HP])
        f_g = jax.nn.sigmoid(gates[:, 1 * HP:2 * HP])
        g_g = jnp.tanh(gates[:, 2 * HP:3 * HP])
        o_g = jax.nn.sigmoid(gates[:, 3 * HP:4 * HP])

        c = f_g * c + i_g * g_g        # padded lanes stay exactly 0
        h = o_g * jnp.tanh(c)

    logits = (jnp.dot(h.astype(wfc_ref.dtype), wfc_ref[...],
                      preferred_element_type=jnp.float32) + bfc_ref[...])  # [B, O]
    m = jnp.max(logits, axis=1, keepdims=True)
    e = jnp.exp(logits - m)
    denom = jnp.sum(e, axis=1, keepdims=True)
    out_ref[...] = e * pl.reciprocal(denom, approx=True)   # EUP vrcp, free slot


@jax.jit
def torch_model_forward(x_tokens, emb_table, w_ih, w_hh, b_gates, w_fc, b_fc):
    """Equivalent of TorchModel.forward(x) with y=None (returns softmax probs)."""
    B, T = x_tokens.shape
    H = w_hh.shape[0]
    O = w_fc.shape[1]
    VOCAB = emb_table.shape[0]
    HP = 128                           # lane-padded hidden per gate
    G = 4 * HP

    # Fuse embedding + input projection + bias once (outside the recurrence).
    proj = jnp.dot(emb_table, w_ih, preferred_element_type=jnp.float32) + b_gates  # [VOCAB, 4H]

    def pad_gate_lanes(w):
        # [R, 4H] -> [R, 4*HP]: each gate's H columns land in lanes 0:H of its
        # own 128-lane group; remaining lanes are exact zeros.
        r = w.shape[0]
        return jnp.pad(w.reshape(r, 4, H), ((0, 0), (0, 0), (0, HP - H))).reshape(r, G)

    proj_pad = pad_gate_lanes(proj)                                              # [VOCAB, 4*HP] f32
    whh_pad = jnp.pad(pad_gate_lanes(w_hh), ((0, HP - H), (0, 0))).astype(jnp.bfloat16)  # [HP, 4*HP]
    wfc_pad = jnp.pad(w_fc, ((0, HP - H), (0, 0))).astype(jnp.bfloat16)          # [HP, O]

    out = pl.pallas_call(
        lstm_fc_softmax_kernel,
        out_shape=jax.ShapeDtypeStruct((B, O), jnp.float32),
        grid_spec=pltpu.PrefetchScalarGridSpec(
            num_scalar_prefetch=1,          # x_tokens -> SMEM
            grid=(1,),
            in_specs=[
                pl.BlockSpec((VOCAB, G), lambda i, toks: (0, 0)),
                pl.BlockSpec((HP, G), lambda i, toks: (0, 0)),
                pl.BlockSpec((HP, O), lambda i, toks: (0, 0)),
                pl.BlockSpec((1, O), lambda i, toks: (0, 0)),
            ],
            out_specs=pl.BlockSpec((B, O), lambda i, toks: (0, 0)),
        ),
    )(x_tokens.astype(jnp.int32), proj_pad, whh_pad, wfc_pad, b_fc)
    return out


def reference_forward(x_tokens, emb_table, w_ih, w_hh, b_gates, w_fc, b_fc):
    """Pure-JAX reference of the same forward pass (same bf16 weight dtypes)."""
    H = w_hh.shape[0]
    proj_table = jnp.dot(emb_table, w_ih,
                         preferred_element_type=jnp.float32) + b_gates
    gates_x = jnp.take(proj_table, x_tokens.T, axis=0)   # [T, B, 4H]
    T, B, _ = gates_x.shape
    w_hh_b = w_hh.astype(jnp.bfloat16)
    w_fc_b = w_fc.astype(jnp.bfloat16)
    h = jnp.zeros((B, H), jnp.float32)
    c = jnp.zeros((B, H), jnp.float32)
    for t in range(T):
        gates = gates_x[t] + jnp.dot(h.astype(jnp.bfloat16), w_hh_b,
                                     preferred_element_type=jnp.float32)
        i_g = jax.nn.sigmoid(gates[:, 0 * H:1 * H])
        f_g = jax.nn.sigmoid(gates[:, 1 * H:2 * H])
        g_g = jnp.tanh(gates[:, 2 * H:3 * H])
        o_g = jax.nn.sigmoid(gates[:, 3 * H:4 * H])
        c = f_g * c + i_g * g_g
        h = o_g * jnp.tanh(c)
    logits = jnp.dot(h.astype(jnp.bfloat16), w_fc_b,
                     preferred_element_type=jnp.float32) + b_fc
    return jax.nn.softmax(logits, axis=1)


if __name__ == "__main__":
    # Small shapes consistent with the module: vocab=32, embed=16, hidden=32, out=8.
    VOCAB, E, H, O = 32, 16, 32, 8
    B, T = 2, 8

    key = jax.random.PRNGKey(0)
    ks = jax.random.split(key, 8)
    bound = 1.0 / jnp.sqrt(H)

    emb_table = jax.random.normal(ks[0], (VOCAB, E), jnp.float32)             # nn.Embedding ~ N(0,1)
    w_ih = jax.random.uniform(ks[1], (E, 4 * H), jnp.float32, -bound, bound)  # lstm weight_ih^T
    w_hh = jax.random.uniform(ks[2], (H, 4 * H), jnp.float32, -bound, bound)  # lstm weight_hh^T
    b_ih = jax.random.uniform(ks[3], (1, 4 * H), jnp.float32, -bound, bound)
    b_hh = jax.random.uniform(ks[4], (1, 4 * H), jnp.float32, -bound, bound)
    b_gates = b_ih + b_hh
    w_fc = jax.random.uniform(ks[5], (H, O), jnp.float32, -bound, bound)      # fc weight^T
    b_fc = jax.random.uniform(ks[6], (1, O), jnp.float32, -bound, bound)

    x_tokens = jax.random.randint(ks[7], (B, T), 0, VOCAB, dtype=jnp.int32)

    probs = torch_model_forward(x_tokens, emb_table, w_ih, w_hh, b_gates, w_fc, b_fc)
    probs = jax.block_until_ready(probs)

    ref = reference_forward(x_tokens, emb_table, w_ih, w_hh, b_gates, w_fc, b_fc)
    assert probs.shape == (B, O)
    # Tolerances loosened slightly for pl.reciprocal(approx=True) in the softmax.
    assert jnp.allclose(jnp.sum(probs, axis=1), 1.0, atol=5e-3)
    assert jnp.allclose(probs, ref, atol=5e-3, rtol=5e-3)

    # TODO(synk): training path (nn.CrossEntropyLoss when y is provided) is not
    # implemented; only the inference (softmax) branch is kernelized.
    print("KERNEL_OK")
</pallas_src>

<mosaic_0001>
module attributes {stable_mosaic.version = 11 : i64} {
  func.func @lstm_fc_softmax_kernel(%arg0: i32, %arg1: memref<2x8xi32, #tpu.memory_space<smem>>, %arg2: memref<32x512xf32, #tpu.memory_space<vmem>>, %arg3: memref<128x512xbf16, #tpu.memory_space<vmem>>, %arg4: memref<128x8xbf16, #tpu.memory_space<vmem>>, %arg5: memref<1x8xf32, #tpu.memory_space<vmem>>, %arg6: memref<2x8xf32, #tpu.memory_space<vmem>>) attributes {dimension_semantics = [#tpu.dimension_semantics<arbitrary>], iteration_bounds = array<i64: 1>, scalar_prefetch = 1 : i64, scratch_operands = 0 : i64, tpu.core_type = #tpu.core_type<tc>, window_params = [{pipeline_mode = #tpu.pipeline_mode<synchronous>, transform_indices = @transform_0, window_bounds = array<i64: 32, 512>}, {pipeline_mode = #tpu.pipeline_mode<synchronous>, transform_indices = @transform_1, window_bounds = array<i64: 128, 512>}, {pipeline_mode = #tpu.pipeline_mode<synchronous>, transform_indices = @transform_2, window_bounds = array<i64: 128, 8>}, {pipeline_mode = #tpu.pipeline_mode<synchronous>, transform_indices = @transform_3, window_bounds = array<i64: 1, 8>}, {pipeline_mode = #tpu.pipeline_mode<synchronous>, transform_indices = @transform_4, window_bounds = array<i64: 2, 8>}]} {
    %c0 = arith.constant 0 : index
    %c0_0 = arith.constant 0 : index
    %0 = vector.load %arg3[%c0, %c0_0] : memref<128x512xbf16, #tpu.memory_space<vmem>>, vector<128x512xbf16>
    %cst = arith.constant 0.000000e+00 : f32
    %1 = vector.broadcast %cst : f32 to vector<2x128xf32>
    %cst_1 = arith.constant 0.000000e+00 : f32
    %2 = vector.broadcast %cst_1 : f32 to vector<2x128xf32>
    %c0_2 = arith.constant 0 : index
    %c0_3 = arith.constant 0 : index
    %3 = memref.load %arg1[%c0_2, %c0_3] : memref<2x8xi32, #tpu.memory_space<smem>>
    %4 = arith.index_cast %3 : i32 to index
    %c0_4 = arith.constant 0 : index
    %5 = vector.load %arg2[%4, %c0_4] : memref<32x512xf32, #tpu.memory_space<vmem>>, vector<1x512xf32>
    %c1 = arith.constant 1 : index
    %c0_5 = arith.constant 0 : index
    %6 = memref.load %arg1[%c1, %c0_5] : memref<2x8xi32, #tpu.memory_space<smem>>
    %7 = arith.index_cast %6 : i32 to index
    %c0_6 = arith.constant 0 : index
    %8 = vector.load %arg2[%7, %c0_6] : memref<32x512xf32, #tpu.memory_space<vmem>>, vector<1x512xf32>
    %9 = tpu.concatenate %5, %8 in 0 : vector<1x512xf32>, vector<1x512xf32> -> vector<2x512xf32>
    %10 = arith.truncf %1 : vector<2x128xf32> to vector<2x128xbf16>
    %cst_7 = arith.constant dense<0.000000e+00> : vector<2x512xf32>
    %11 = tpu.matmul %10, %0, %cst_7 {dimension_numbers = #tpu.dot_dimension_numbers<[1], [0], [0], [1], [0, 0, 1, 1], [], []>} : vector<2x128xbf16>, vector<128x512xbf16>, vector<2x512xf32> -> vector<2x512xf32>
    %12 = arith.addf %9, %11 : vector<2x512xf32>
    %13 = vector.extract_strided_slice %12 {offsets = [0, 0], sizes = [2, 128], strides = [1, 1]} : vector<2x512xf32> to vector<2x128xf32>
    %14 = arith.negf %13 : vector<2x128xf32>
    %15 = math.exp %14 : vector<2x128xf32>
    %cst_8 = arith.constant 1.000000e+00 : f32
    %16 = vector.broadcast %cst_8 : f32 to vector<2x128xf32>
    %17 = arith.addf %16, %15 : vector<2x128xf32>
    %18 = arith.divf %16, %17 : vector<2x128xf32>
    %19 = vector.extract_strided_slice %12 {offsets = [0, 128], sizes = [2, 128], strides = [1, 1]} : vector<2x512xf32> to vector<2x128xf32>
    %20 = arith.negf %19 : vector<2x128xf32>
    %21 = math.exp %20 : vector<2x128xf32>
    %cst_9 = arith.constant 1.000000e+00 : f32
    %22 = vector.broadcast %cst_9 : f32 to vector<2x128xf32>
    %23 = arith.addf %22, %21 : vector<2x128xf32>
    %24 = arith.divf %22, %23 : vector<2x128xf32>
    %25 = vector.extract_strided_slice %12 {offsets = [0, 256], sizes = [2, 128], strides = [1, 1]} : vector<2x512xf32> to vector<2x128xf32>
    %26 = math.tanh %25 : vector<2x128xf32>
    %27 = vector.extract_strided_slice %12 {offsets = [0, 384], sizes = [2, 128], strides = [1, 1]} : vector<2x512xf32> to vector<2x128xf32>
    %28 = arith.negf %27 : vector<2x128xf32>
    %29 = math.exp %28 : vector<2x128xf32>
    %cst_10 = arith.constant 1.000000e+00 : f32
    %30 = vector.broadcast %cst_10 : f32 to vector<2x128xf32>
    %31 = arith.addf %30, %29 : vector<2x128xf32>
    %32 = arith.divf %30, %31 : vector<2x128xf32>
    %33 = arith.mulf %24, %2 : vector<2x128xf32>
    %34 = arith.mulf %18, %26 : vector<2x128xf32>
    %35 = arith.addf %33, %34 : vector<2x128xf32>
    %36 = math.tanh %35 : vector<2x128xf32>
    %37 = arith.mulf %32, %36 : vector<2x128xf32>
    %c0_11 = arith.constant 0 : index
    %c1_12 = arith.constant 1 : index
    %38 = memref.load %arg1[%c0_11, %c1_12] : memref<2x8xi32, #tpu.memory_space<smem>>
    %39 = arith.index_cast %38 : i32 to index
    %c0_13 = arith.constant 0 : index
    %40 = vector.load %arg2[%39, %c0_13] : memref<32x512xf32, #tpu.memory_space<vmem>>, vector<1x512xf32>
    %c1_14 = arith.constant 1 : index
    %c1_15 = arith.constant 1 : index
    %41 = memref.load %arg1[%c1_14, %c1_15] : memref<2x8xi32, #tpu.memory_space<smem>>
    %42 = arith.index_cast %41 : i32 to index
    %c0_16 = arith.constant 0 : index
    %43 = vector.load %arg2[%42, %c0_16] : memref<32x512xf32, #tpu.memory_space<vmem>>, vector<1x512xf32>
    %44 = tpu.concatenate %40, %43 in 0 : vector<1x512xf32>, vector<1x512xf32> -> vector<2x512xf32>
    %45 = arith.truncf %37 : vector<2x128xf32> to vector<2x128xbf16>
    %cst_17 = arith.constant dense<0.000000e+00> : vector<2x512xf32>
    %46 = tpu.matmul %45, %0, %cst_17 {dimension_numbers = #tpu.dot_dimension_numbers<[1], [0], [0], [1], [0, 0, 1, 1], [], []>} : vector<2x128xbf16>, vector<128x512xbf16>, vector<2x512xf32> -> vector<2x512xf32>
    %47 = arith.addf %44, %46 : vector<2x512xf32>
    %48 = vector.extract_strided_slice %47 {offsets = [0, 0], sizes = [2, 128], strides = [1, 1]} : vector<2x512xf32> to vector<2x128xf32>
    %49 = arith.negf %48 : vector<2x128xf32>
    %50 = math.exp %49 : vector<2x128xf32>
    %cst_18 = arith.constant 1.000000e+00 : f32
    %51 = vector.broadcast %cst_18 : f32 to vector<2x128xf32>
    %52 = arith.addf %51, %50 : vector<2x128xf32>
    %53 = arith.divf %51, %52 : vector<2x128xf32>
    %54 = vector.extract_strided_slice %47 {offsets = [0, 128], sizes = [2, 128], strides = [1, 1]} : vector<2x512xf32> to vector<2x128xf32>
    %55 = arith.negf %54 : vector<2x128xf32>
    %56 = math.exp %55 : vector<2x128xf32>
    %cst_19 = arith.constant 1.000000e+00 : f32
    %57 = vector.broadcast %cst_19 : f32 to vector<2x128xf32>
    %58 = arith.addf %57, %56 : vector<2x128xf32>
    %59 = arith.divf %57, %58 : vector<2x128xf32>
    %60 = vector.extract_strided_slice %47 {offsets = [0, 256], sizes = [2, 128], strides = [1, 1]} : vector<2x512xf32> to vector<2x128xf32>
    %61 = math.tanh %60 : vector<2x128xf32>
    %62 = vector.extract_strided_slice %47 {offsets = [0, 384], sizes = [2, 128], strides = [1, 1]} : vector<2x512xf32> to vector<2x128xf32>
    %63 = arith.negf %62 : vector<2x128xf32>
    %64 = math.exp %63 : vector<2x128xf32>
    %cst_20 = arith.constant 1.000000e+00 : f32
    %65 = vector.broadcast %cst_20 : f32 to vector<2x128xf32>
    %66 = arith.addf %65, %64 : vector<2x128xf32>
    %67 = arith.divf %65, %66 : vector<2x128xf32>
    %68 = arith.mulf %59, %35 : vector<2x128xf32>
    %69 = arith.mulf %53, %61 : vector<2x128xf32>
    %70 = arith.addf %68, %69 : vector<2x128xf32>
    %71 = math.tanh %70 : vector<2x128xf32>
    %72 = arith.mulf %67, %71 : vector<2x128xf32>
    %c0_21 = arith.constant 0 : index
    %c2 = arith.constant 2 : index
    %73 = memref.load %arg1[%c0_21, %c2] : memref<2x8xi32, #tpu.memory_space<smem>>
    %74 = arith.index_cast %73 : i32 to index
    %c0_22 = arith.constant 0 : index
    %75 = vector.load %arg2[%74, %c0_22] : memref<32x512xf32, #tpu.memory_space<vmem>>, vector<1x512xf32>
    %c1_23 = arith.constant 1 : index
    %c2_24 = arith.constant 2 : index
    %76 = memref.load %arg1[%c1_23, %c2_24] : memref<2x8xi32, #tpu.memory_space<smem>>
    %77 = arith.index_cast %76 : i32 to index
    %c0_25 = arith.constant 0 : index
    %78 = vector.load %arg2[%77, %c0_25] : memref<32x512xf32, #tpu.memory_space<vmem>>, vector<1x512xf32>
    %79 = tpu.concatenate %75, %78 in 0 : vector<1x512xf32>, vector<1x512xf32> -> vector<2x512xf32>
    %80 = arith.truncf %72 : vector<2x128xf32> to vector<2x128xbf16>
    %cst_26 = arith.constant dense<0.000000e+00> : vector<2x512xf32>
    %81 = tpu.matmul %80, %0, %cst_26 {dimension_numbers = #tpu.dot_dimension_numbers<[1], [0], [0], [1], [0, 0, 1, 1], [], []>} : vector<2x128xbf16>, vector<128x512xbf16>, vector<2x512xf32> -> vector<2x512xf32>
    %82 = arith.addf %79, %81 : vector<2x512xf32>
    %83 = vector.extract_strided_slice %82 {offsets = [0, 0], sizes = [2, 128], strides = [1, 1]} : vector<2x512xf32> to vector<2x128xf32>
    %84 = arith.negf %83 : vector<2x128xf32>
    %85 = math.exp %84 : vector<2x128xf32>
    %cst_27 = arith.constant 1.000000e+00 : f32
    %86 = vector.broadcast %cst_27 : f32 to vector<2x128xf32>
    %87 = arith.addf %86, %85 : vector<2x128xf32>
    %88 = arith.divf %86, %87 : vector<2x128xf32>
    %89 = vector.extract_strided_slice %82 {offsets = [0, 128], sizes = [2, 128], strides = [1, 1]} : vector<2x512xf32> to vector<2x128xf32>
    %90 = arith.negf %89 : vector<2x128xf32>
    %91 = math.exp %90 : vector<2x128xf32>
    %cst_28 = arith.constant 1.000000e+00 : f32
    %92 = vector.broadcast %cst_28 : f32 to vector<2x128xf32>
    %93 = arith.addf %92, %91 : vector<2x128xf32>
    %94 = arith.divf %92, %93 : vector<2x128xf32>
    %95 = vector.extract_strided_slice %82 {offsets = [0, 256], sizes = [2, 128], strides = [1, 1]} : vector<2x512xf32> to vector<2x128xf32>
    %96 = math.tanh %95 : vector<2x128xf32>
    %97 = vector.extract_strided_slice %82 {offsets = [0, 384], sizes = [2, 128], strides = [1, 1]} : vector<2x512xf32> to vector<2x128xf32>
    %98 = arith.negf %97 : vector<2x128xf32>
    %99 = math.exp %98 : vector<2x128xf32>
    %cst_29 = arith.constant 1.000000e+00 : f32
    %100 = vector.broadcast %cst_29 : f32 to vector<2x128xf32>
    %101 = arith.addf %100, %99 : vector<2x128xf32>
    %102 = arith.divf %100, %101 : vector<2x128xf32>
    %103 = arith.mulf %94, %70 : vector<2x128xf32>
    %104 = arith.mulf %88, %96 : vector<2x128xf32>
    %105 = arith.addf %103, %104 : vector<2x128xf32>
    %106 = math.tanh %105 : vector<2x128xf32>
    %107 = arith.mulf %102, %106 : vector<2x128xf32>
    %c0_30 = arith.constant 0 : index
    %c3 = arith.constant 3 : index
    %108 = memref.load %arg1[%c0_30, %c3] : memref<2x8xi32, #tpu.memory_space<smem>>
    %109 = arith.index_cast %108 : i32 to index
    %c0_31 = arith.constant 0 : index
    %110 = vector.load %arg2[%109, %c0_31] : memref<32x512xf32, #tpu.memory_space<vmem>>, vector<1x512xf32>
    %c1_32 = arith.constant 1 : index
    %c3_33 = arith.constant 3 : index
    %111 = memref.load %arg1[%c1_32, %c3_33] : memref<2x8xi32, #tpu.memory_space<smem>>
    %112 = arith.index_cast %111 : i32 to index
    %c0_34 = arith.constant 0 : index
    %113 = vector.load %arg2[%112, %c0_34] : memref<32x512xf32, #tpu.memory_space<vmem>>, vector<1x512xf32>
    %114 = tpu.concatenate %110, %113 in 0 : vector<1x512xf32>, vector<1x512xf32> -> vector<2x512xf32>
    %115 = arith.truncf %107 : vector<2x128xf32> to vector<2x128xbf16>
    %cst_35 = arith.constant dense<0.000000e+00> : vector<2x512xf32>
    %116 = tpu.matmul %115, %0, %cst_35 {dimension_numbers = #tpu.dot_dimension_numbers<[1], [0], [0], [1], [0, 0, 1, 1], [], []>} : vector<2x128xbf16>, vector<128x512xbf16>, vector<2x512xf32> -> vector<2x512xf32>
    %117 = arith.addf %114, %116 : vector<2x512xf32>
    %118 = vector.extract_strided_slice %117 {offsets = [0, 0], sizes = [2, 128], strides = [1, 1]} : vector<2x512xf32> to vector<2x128xf32>
    %119 = arith.negf %118 : vector<2x128xf32>
    %120 = math.exp %119 : vector<2x128xf32>
    %cst_36 = arith.constant 1.000000e+00 : f32
    %121 = vector.broadcast %cst_36 : f32 to vector<2x128xf32>
    %122 = arith.addf %121, %120 : vector<2x128xf32>
    %123 = arith.divf %121, %122 : vector<2x128xf32>
    %124 = vector.extract_strided_slice %117 {offsets = [0, 128], sizes = [2, 128], strides = [1, 1]} : vector<2x512xf32> to vector<2x128xf32>
    %125 = arith.negf %124 : vector<2x128xf32>
    %126 = math.exp %125 : vector<2x128xf32>
    %cst_37 = arith.constant 1.000000e+00 : f32
    %127 = vector.broadcast %cst_37 : f32 to vector<2x128xf32>
    %128 = arith.addf %127, %126 : vector<2x128xf32>
    %129 = arith.divf %127, %128 : vector<2x128xf32>
    %130 = vector.extract_strided_slice %117 {offsets = [0, 256], sizes = [2, 128], strides = [1, 1]} : vector<2x512xf32> to vector<2x128xf32>
    %131 = math.tanh %130 : vector<2x128xf32>
    %132 = vector.extract_strided_slice %117 {offsets = [0, 384], sizes = [2, 128], strides = [1, 1]} : vector<2x512xf32> to vector<2x128xf32>
    %133 = arith.negf %132 : vector<2x128xf32>
    %134 = math.exp %133 : vector<2x128xf32>
    %cst_38 = arith.constant 1.000000e+00 : f32
    %135 = vector.broadcast %cst_38 : f32 to vector<2x128xf32>
    %136 = arith.addf %135, %134 : vector<2x128xf32>
    %137 = arith.divf %135, %136 : vector<2x128xf32>
    %138 = arith.mulf %129, %105 : vector<2x128xf32>
    %139 = arith.mulf %123, %131 : vector<2x128xf32>
    %140 = arith.addf %138, %139 : vector<2x128xf32>
    %141 = math.tanh %140 : vector<2x128xf32>
    %142 = arith.mulf %137, %141 : vector<2x128xf32>
    %c0_39 = arith.constant 0 : index
    %c4 = arith.constant 4 : index
    %143 = memref.load %arg1[%c0_39, %c4] : memref<2x8xi32, #tpu.memory_space<smem>>
    %144 = arith.index_cast %143 : i32 to index
    %c0_40 = arith.constant 0 : index
    %145 = vector.load %arg2[%144, %c0_40] : memref<32x512xf32, #tpu.memory_space<vmem>>, vector<1x512xf32>
    %c1_41 = arith.constant 1 : index
    %c4_42 = arith.constant 4 : index
    %146 = memref.load %arg1[%c1_41, %c4_42] : memref<2x8xi32, #tpu.memory_space<smem>>
    %147 = arith.index_cast %146 : i32 to index
    %c0_43 = arith.constant 0 : index
    %148 = vector.load %arg2[%147, %c0_43] : memref<32x512xf32, #tpu.memory_space<vmem>>, vector<1x512xf32>
    %149 = tpu.concatenate %145, %148 in 0 : vector<1x512xf32>, vector<1x512xf32> -> vector<2x512xf32>
    %150 = arith.truncf %142 : vector<2x128xf32> to vector<2x128xbf16>
    %cst_44 = arith.constant dense<0.000000e+00> : vector<2x512xf32>
    %151 = tpu.matmul %150, %0, %cst_44 {dimension_numbers = #tpu.dot_dimension_numbers<[1], [0], [0], [1], [0, 0, 1, 1], [], []>} : vector<2x128xbf16>, vector<128x512xbf16>, vector<2x512xf32> -> vector<2x512xf32>
    %152 = arith.addf %149, %151 : vector<2x512xf32>
    %153 = vector.extract_strided_slice %152 {offsets = [0, 0], sizes = [2, 128], strides = [1, 1]} : vector<2x512xf32> to vector<2x128xf32>
    %154 = arith.negf %153 : vector<2x128xf32>
    %155 = math.exp %154 : vector<2x128xf32>
    %cst_45 = arith.constant 1.000000e+00 : f32
    %156 = vector.broadcast %cst_45 : f32 to vector<2x128xf32>
    %157 = arith.addf %156, %155 : vector<2x128xf32>
    %158 = arith.divf %156, %157 : vector<2x128xf32>
    %159 = vector.extract_strided_slice %152 {offsets = [0, 128], sizes = [2, 128], strides = [1, 1]} : vector<2x512xf32> to vector<2x128xf32>
    %160 = arith.negf %159 : vector<2x128xf32>
    %161 = math.exp %160 : vector<2x128xf32>
    %cst_46 = arith.constant 1.000000e+00 : f32
    %162 = vector.broadcast %cst_46 : f32 to vector<2x128xf32>
    %163 = arith.addf %162, %161 : vector<2x128xf32>
    %164 = arith.divf %162, %163 : vector<2x128xf32>
    %165 = vector.extract_strided_slice %152 {offsets = [0, 256], sizes = [2, 128], strides = [1, 1]} : vector<2x512xf32> to vector<2x128xf32>
    %166 = math.tanh %165 : vector<2x128xf32>
    %167 = vector.extract_strided_slice %152 {offsets = [0, 384], sizes = [2, 128], strides = [1, 1]} : vector<2x512xf32> to vector<2x128xf32>
    %168 = arith.negf %167 : vector<2x128xf32>
    %169 = math.exp %168 : vector<2x128xf32>
    %cst_47 = arith.constant 1.000000e+00 : f32
    %170 = vector.broadcast %cst_47 : f32 to vector<2x128xf32>
    %171 = arith.addf %170, %169 : vector<2x128xf32>
    %172 = arith.divf %170, %171 : vector<2x128xf32>
    %173 = arith.mulf %164, %140 : vector<2x128xf32>
    %174 = arith.mulf %158, %166 : vector<2x128xf32>
    %175 = arith.addf %173, %174 : vector<2x128xf32>
    %176 = math.tanh %175 : vector<2x128xf32>
    %177 = arith.mulf %172, %176 : vector<2x128xf32>
    %c0_48 = arith.constant 0 : index
    %c5 = arith.constant 5 : index
    %178 = memref.load %arg1[%c0_48, %c5] : memref<2x8xi32, #tpu.memory_space<smem>>
    %179 = arith.index_cast %178 : i32 to index
    %c0_49 = arith.constant 0 : index
    %180 = vector.load %arg2[%179, %c0_49] : memref<32x512xf32, #tpu.memory_space<vmem>>, vector<1x512xf32>
    %c1_50 = arith.constant 1 : index
    %c5_51 = arith.constant 5 : index
    %181 = memref.load %arg1[%c1_50, %c5_51] : memref<2x8xi32, #tpu.memory_space<smem>>
    %182 = arith.index_cast %181 : i32 to index
    %c0_52 = arith.constant 0 : index
    %183 = vector.load %arg2[%182, %c0_52] : memref<32x512xf32, #tpu.memory_space<vmem>>, vector<1x512xf32>
    %184 = tpu.concatenate %180, %183 in 0 : vector<1x512xf32>, vector<1x512xf32> -> vector<2x512xf32>
    %185 = arith.truncf %177 : vector<2x128xf32> to vector<2x128xbf16>
    %cst_53 = arith.constant dense<0.000000e+00> : vector<2x512xf32>
    %186 = tpu.matmul %185, %0, %cst_53 {dimension_numbers = #tpu.dot_dimension_numbers<[1], [0], [0], [1], [0, 0, 1, 1], [], []>} : vector<2x128xbf16>, vector<128x512xbf16>, vector<2x512xf32> -> vector<2x512xf32>
    %187 = arith.addf %184, %186 : vector<2x512xf32>
    %188 = vector.extract_strided_slice %187 {offsets = [0, 0], sizes = [2, 128], strides = [1, 1]} : vector<2x512xf32> to vector<2x128xf32>
    %189 = arith.negf %188 : vector<2x128xf32>
    %190 = math.exp %189 : vector<2x128xf32>
    %cst_54 = arith.constant 1.000000e+00 : f32
    %191 = vector.broadcast %cst_54 : f32 to vector<2x128xf32>
    %192 = arith.addf %191, %190 : vector<2x128xf32>
    %193 = arith.divf %191, %192 : vector<2x128xf32>
    %194 = vector.extract_strided_slice %187 {offsets = [0, 128], sizes = [2, 128], strides = [1, 1]} : vector<2x512xf32> to vector<2x128xf32>
    %195 = arith.negf %194 : vector<2x128xf32>
    %196 = math.exp %195 : vector<2x128xf32>
    %cst_55 = arith.constant 1.000000e+00 : f32
    %197 = vector.broadcast %cst_55 : f32 to vector<2x128xf32>
    %198 = arith.addf %197, %196 : vector<2x128xf32>
    %199 = arith.divf %197, %198 : vector<2x128xf32>
    %200 = vector.extract_strided_slice %187 {offsets = [0, 256], sizes = [2, 128], strides = [1, 1]} : vector<2x512xf32> to vector<2x128xf32>
    %201 = math.tanh %200 : vector<2x128xf32>
    %202 = vector.extract_strided_slice %187 {offsets = [0, 384], sizes = [2, 128], strides = [1, 1]} : vector<2x512xf32> to vector<2x128xf32>
    %203 = arith.negf %202 : vector<2x128xf32>
    %204 = math.exp %203 : vector<2x128xf32>
    %cst_56 = arith.constant 1.000000e+00 : f32
    %205 = vector.broadcast %cst_56 : f32 to vector<2x128xf32>
    %206 = arith.addf %205, %204 : vector<2x128xf32>
    %207 = arith.divf %205, %206 : vector<2x128xf32>
    %208 = arith.mulf %199, %175 : vector<2x128xf32>
    %209 = arith.mulf %193, %201 : vector<2x128xf32>
    %210 = arith.addf %208, %209 : vector<2x128xf32>
    %211 = math.tanh %210 : vector<2x128xf32>
    %212 = arith.mulf %207, %211 : vector<2x128xf32>
    %c0_57 = arith.constant 0 : index
    %c6 = arith.constant 6 : index
    %213 = memref.load %arg1[%c0_57, %c6] : memref<2x8xi32, #tpu.memory_space<smem>>
    %214 = arith.index_cast %213 : i32 to index
    %c0_58 = arith.constant 0 : index
    %215 = vector.load %arg2[%214, %c0_58] : memref<32x512xf32, #tpu.memory_space<vmem>>, vector<1x512xf32>
    %c1_59 = arith.constant 1 : index
    %c6_60 = arith.constant 6 : index
    %216 = memref.load %arg1[%c1_59, %c6_60] : memref<2x8xi32, #tpu.memory_space<smem>>
    %217 = arith.index_cast %216 : i32 to index
    %c0_61 = arith.constant 0 : index
    %218 = vector.load %arg2[%217, %c0_61] : memref<32x512xf32, #tpu.memory_space<vmem>>, vector<1x512xf32>
    %219 = tpu.concatenate %215, %218 in 0 : vector<1x512xf32>, vector<1x512xf32> -> vector<2x512xf32>
    %220 = arith.truncf %212 : vector<2x128xf32> to vector<2x128xbf16>
    %cst_62 = arith.constant dense<0.000000e+00> : vector<2x512xf32>
    %221 = tpu.matmul %220, %0, %cst_62 {dimension_numbers = #tpu.dot_dimension_numbers<[1], [0], [0], [1], [0, 0, 1, 1], [], []>} : vector<2x128xbf16>, vector<128x512xbf16>, vector<2x512xf32> -> vector<2x512xf32>
    %222 = arith.addf %219, %221 : vector<2x512xf32>
    %223 = vector.extract_strided_slice %222 {offsets = [0, 0], sizes = [2, 128], strides = [1, 1]} : vector<2x512xf32> to vector<2x128xf32>
    %224 = arith.negf %223 : vector<2x128xf32>
    %225 = math.exp %224 : vector<2x128xf32>
    %cst_63 = arith.constant 1.000000e+00 : f32
    %226 = vector.broadcast %cst_63 : f32 to vector<2x128xf32>
    %227 = arith.addf %226, %225 : vector<2x128xf32>
    %228 = arith.divf %226, %227 : vector<2x128xf32>
    %229 = vector.extract_strided_slice %222 {offsets = [0, 128], sizes = [2, 128], strides = [1, 1]} : vector<2x512xf32> to vector<2x128xf32>
    %230 = arith.negf %229 : vector<2x128xf32>
    %231 = math.exp %230 : vector<2x128xf32>
    %cst_64 = arith.constant 1.000000e+00 : f32
    %232 = vector.broadcast %cst_64 : f32 to vector<2x128xf32>
    %233 = arith.addf %232, %231 : vector<2x128xf32>
    %234 = arith.divf %232, %233 : vector<2x128xf32>
    %235 = vector.extract_strided_slice %222 {offsets = [0, 256], sizes = [2, 128], strides = [1, 1]} : vector<2x512xf32> to vector<2x128xf32>
    %236 = math.tanh %235 : vector<2x128xf32>
    %237 = vector.extract_strided_slice %222 {offsets = [0, 384], sizes = [2, 128], strides = [1, 1]} : vector<2x512xf32> to vector<2x128xf32>
    %238 = arith.negf %237 : vector<2x128xf32>
    %239 = math.exp %238 : vector<2x128xf32>
    %cst_65 = arith.constant 1.000000e+00 : f32
    %240 = vector.broadcast %cst_65 : f32 to vector<2x128xf32>
    %241 = arith.addf %240, %239 : vector<2x128xf32>
    %242 = arith.divf %240, %241 : vector<2x128xf32>
    %243 = arith.mulf %234, %210 : vector<2x128xf32>
    %244 = arith.mulf %228, %236 : vector<2x128xf32>
    %245 = arith.addf %243, %244 : vector<2x128xf32>
    %246 = math.tanh %245 : vector<2x128xf32>
    %247 = arith.mulf %242, %246 : vector<2x128xf32>
    %c0_66 = arith.constant 0 : index
    %c7 = arith.constant 7 : index
    %248 = memref.load %arg1[%c0_66, %c7] : memref<2x8xi32, #tpu.memory_space<smem>>
    %249 = arith.index_cast %248 : i32 to index
    %c0_67 = arith.constant 0 : index
    %250 = vector.load %arg2[%249, %c0_67] : memref<32x512xf32, #tpu.memory_space<vmem>>, vector<1x512xf32>
    %c1_68 = arith.constant 1 : index
    %c7_69 = arith.constant 7 : index
    %251 = memref.load %arg1[%c1_68, %c7_69] : memref<2x8xi32, #tpu.memory_space<smem>>
    %252 = arith.index_cast %251 : i32 to index
    %c0_70 = arith.constant 0 : index
    %253 = vector.load %arg2[%252, %c0_70] : memref<32x512xf32, #tpu.memory_space<vmem>>, vector<1x512xf32>
    %254 = tpu.concatenate %250, %253 in 0 : vector<1x512xf32>, vector<1x512xf32> -> vector<2x512xf32>
    %255 = arith.truncf %247 : vector<2x128xf32> to vector<2x128xbf16>
    %cst_71 = arith.constant dense<0.000000e+00> : vector<2x512xf32>
    %256 = tpu.matmul %255, %0, %cst_71 {dimension_numbers = #tpu.dot_dimension_numbers<[1], [0], [0], [1], [0, 0, 1, 1], [], []>} : vector<2x128xbf16>, vector<128x512xbf16>, vector<2x512xf32> -> vector<2x512xf32>
    %257 = arith.addf %254, %256 : vector<2x512xf32>
    %258 = vector.extract_strided_slice %257 {offsets = [0, 0], sizes = [2, 128], strides = [1, 1]} : vector<2x512xf32> to vector<2x128xf32>
    %259 = arith.negf %258 : vector<2x128xf32>
    %260 = math.exp %259 : vector<2x128xf32>
    %cst_72 = arith.constant 1.000000e+00 : f32
    %261 = vector.broadcast %cst_72 : f32 to vector<2x128xf32>
    %262 = arith.addf %261, %260 : vector<2x128xf32>
    %263 = arith.divf %261, %262 : vector<2x128xf32>
    %264 = vector.extract_strided_slice %257 {offsets = [0, 128], sizes = [2, 128], strides = [1, 1]} : vector<2x512xf32> to vector<2x128xf32>
    %265 = arith.negf %264 : vector<2x128xf32>
    %266 = math.exp %265 : vector<2x128xf32>
    %cst_73 = arith.constant 1.000000e+00 : f32
    %267 = vector.broadcast %cst_73 : f32 to vector<2x128xf32>
    %268 = arith.addf %267, %266 : vector<2x128xf32>
    %269 = arith.divf %267, %268 : vector<2x128xf32>
    %270 = vector.extract_strided_slice %257 {offsets = [0, 256], sizes = [2, 128], strides = [1, 1]} : vector<2x512xf32> to vector<2x128xf32>
    %271 = math.tanh %270 : vector<2x128xf32>
    %272 = vector.extract_strided_slice %257 {offsets = [0, 384], sizes = [2, 128], strides = [1, 1]} : vector<2x512xf32> to vector<2x128xf32>
    %273 = arith.negf %272 : vector<2x128xf32>
    %274 = math.exp %273 : vector<2x128xf32>
    %cst_74 = arith.constant 1.000000e+00 : f32
    %275 = vector.broadcast %cst_74 : f32 to vector<2x128xf32>
    %276 = arith.addf %275, %274 : vector<2x128xf32>
    %277 = arith.divf %275, %276 : vector<2x128xf32>
    %278 = arith.mulf %269, %245 : vector<2x128xf32>
    %279 = arith.mulf %263, %271 : vector<2x128xf32>
    %280 = arith.addf %278, %279 : vector<2x128xf32>
    %281 = math.tanh %280 : vector<2x128xf32>
    %282 = arith.mulf %277, %281 : vector<2x128xf32>
    %283 = arith.truncf %282 : vector<2x128xf32> to vector<2x128xbf16>
    %c0_75 = arith.constant 0 : index
    %c0_76 = arith.constant 0 : index
    %284 = vector.load %arg4[%c0_75, %c0_76] : memref<128x8xbf16, #tpu.memory_space<vmem>>, vector<128x8xbf16>
    %cst_77 = arith.constant dense<0.000000e+00> : vector<2x8xf32>
    %285 = tpu.matmul %283, %284, %cst_77 {dimension_numbers = #tpu.dot_dimension_numbers<[1], [0], [0], [1], [0, 0, 1, 1], [], []>} : vector<2x128xbf16>, vector<128x8xbf16>, vector<2x8xf32> -> vector<2x8xf32>
    %c0_78 = arith.constant 0 : index
    %c0_79 = arith.constant 0 : index
    %286 = vector.load %arg5[%c0_78, %c0_79] : memref<1x8xf32, #tpu.memory_space<vmem>>, vector<1x8xf32>
    %287 = vector.broadcast %286 : vector<1x8xf32> to vector<2x8xf32>
    %288 = arith.addf %285, %287 : vector<2x8xf32>
    %cst_80 = arith.constant dense<0xFF800000> : vector<2xf32>
    %289 = vector.multi_reduction <maximumf>, %288, %cst_80 [1] : vector<2x8xf32> to vector<2xf32>
    %290 = vector.shape_cast %289 : vector<2xf32> to vector<2x1xf32>
    %291 = vector.broadcast %290 : vector<2x1xf32> to vector<2x8xf32>
    %292 = arith.subf %288, %291 : vector<2x8xf32>
    %293 = math.exp %292 : vector<2x8xf32>
    %cst_81 = arith.constant dense<0.000000e+00> : vector<2xf32>
    %294 = vector.multi_reduction <add>, %293, %cst_81 [1] : vector<2x8xf32> to vector<2xf32>
    %295 = vector.shape_cast %294 : vector<2xf32> to vector<2x1xf32>
    %296 = tpu.reciprocal %295 {approx = true} : vector<2x1xf32> -> vector<2x1xf32>
    %297 = vector.broadcast %296 : vector<2x1xf32> to vector<2x8xf32>
    %298 = arith.mulf %293, %297 : vector<2x8xf32>
    %c0_82 = arith.constant 0 : index
    %c0_83 = arith.constant 0 : index
    %299 = vector.load %arg6[%c0_82, %c0_83] : memref<2x8xf32, #tpu.memory_space<vmem>>, vector<2x8xf32>
    tpu.vector_store %arg6[%c0_82, %c0_83], %298 {strides = array<i32>} : memref<2x8xf32, #tpu.memory_space<vmem>>, vector<2x8xf32>,
    return
  }
  func.func @transform_0(%arg0: i32, %arg1: memref<2x8xi32, #tpu.memory_space<smem>>) -> (i32, i32) {
    %c0_i32 = arith.constant 0 : i32
    %c0_i32_0 = arith.constant 0 : i32
    %c0_i32_1 = arith.constant 0 : i32
    return %c0_i32, %c0_i32_0 : i32, i32
  }
  func.func @transform_1(%arg0: i32, %arg1: memref<2x8xi32, #tpu.memory_space<smem>>) -> (i32, i32) {
    %c0_i32 = arith.constant 0 : i32
    %c0_i32_0 = arith.constant 0 : i32
    %c0_i32_1 = arith.constant 0 : i32
    return %c0_i32, %c0_i32_0 : i32, i32
  }
  func.func @transform_2(%arg0: i32, %arg1: memref<2x8xi32, #tpu.memory_space<smem>>) -> (i32, i32) {
    %c0_i32 = arith.constant 0 : i32
    %c0_i32_0 = arith.constant 0 : i32
    %c0_i32_1 = arith.constant 0 : i32
    return %c0_i32, %c0_i32_0 : i32, i32
  }
  func.func @transform_3(%arg0: i32, %arg1: memref<2x8xi32, #tpu.memory_space<smem>>) -> (i32, i32) {
    %c0_i32 = arith.constant 0 : i32
    %c0_i32_0 = arith.constant 0 : i32
    %c0_i32_1 = arith.constant 0 : i32
    return %c0_i32, %c0_i32_0 : i32, i32
  }
  func.func @transform_4(%arg0: i32, %arg1: memref<2x8xi32, #tpu.memory_space<smem>>) -> (i32, i32) {
    %c0_i32 = arith.constant 0 : i32
    %c0_i32_0 = arith.constant 0 : i32
    %c0_i32_1 = arith.constant 0 : i32
    return %c0_i32, %c0_i32_0 : i32, i32
  }
}

</mosaic_0001>

<llo_original>
// kernel: torch_model_forward.1
$region0: #{torch_model_forward.1}
  #allocation0 [shape = 'u32[]', space=smem, size = 0x4, offset = 0x4, fixed_abs, tag = 'smem constant byte address 0x4 - core index']
  #allocation1 [shape = 'u32[144,128]{1,0:T(1,128)}', space=vmem, size = 0x12000, scoped, tag = 'internal scratch']
  #allocation2 [shape = 's32[1]{0}', space=sflag, size = 0x4, scoped, tag = 'scoped memory for torch_model_forward.1']
  #allocation3 [shape = 'u8[1024]{0}', space=smem, size = 0x400, scoped, tag = 'prefetched SMEM operand 0']
  %s0 = inlined_call_operand.vmem [shape: s32[2,8], index: 0, kind: input, shape index: {}]
  %s1 = inlined_call_operand.vmem [shape: f32[32,512], index: 1, kind: input, shape index: {}]
  %s2 = inlined_call_operand.vmem [shape: bf16[128,512], index: 2, kind: input, shape index: {}]
  %s3 = inlined_call_operand.vmem [shape: bf16[128,8], index: 3, kind: input, shape index: {}]
  %s4 = inlined_call_operand.vmem [shape: f32[1,8], index: 4, kind: input, shape index: {}]
  %s5 = inlined_call_operand.hbm [shape: f32[2,8], index: 5, kind: output, shape index: {}]
  %s6 = sld [smem:[#allocation0]]
  $region26: #{torch_model_forward.1} parent=0
    _
  %s8 = ssub.s32 1, %s6
  %s9 = scalar_select 0, %s8, %s6
  %s10 = sshll.u32 %s0, 4
  %s11 = int_to_ptr.vmem [resolvable:$true] %s10
  %13 = dma.vmem_to_smem %s11, 32, [#allocation3], [#allocation2]
  %14 = dma.done [#allocation2], 32
  %15 = sfence
  $region1: #{torch_model_forward.1} parent=0
    #allocation4 [shape = 'u8[1024]{0}', space=vmem, size = 0x400, scoped, tag = 'output window, operand 0, single buffered']
    #allocation5 [shape = 's32[1]{0}', space=sflag, size = 0x4, scoped, tag = 'scoped memory for torch_model_forward.1']
    %16 = vsyncpa [#allocation5], 0
    // Predicated region
    $region2: #{torch_model_forward.1} parent=1 // pred_check
      _
    $region3: #{torch_model_forward.1} parent=1 // pred_check_branch
      %18 = sbr.rel (0) target = $region5
    $region4: #{torch_model_forward.1} parent=1 // pred_region
      _
    $region5: #{torch_model_forward.1} parent=1 // pred_fallthru
      _
    // Predicated region
    $region6: #{torch_model_forward.1} parent=1 // pred_check
      _
    $region7: #{torch_model_forward.1} parent=1 // pred_check_branch
      %20 = sbr.rel (0) target = $region9
    $region8: #{torch_model_forward.1} parent=1 // pred_region
      _
    $region9: #{torch_model_forward.1} parent=1 // pred_fallthru
      _
    // Predicated region
    $region10: #{torch_model_forward.1} parent=1 // pred_check
      _
    $region11: #{torch_model_forward.1} parent=1 // pred_check_branch
      %22 = sbr.rel (0) target = $region13
    $region12: #{torch_model_forward.1} parent=1 // pred_region
      _
    $region13: #{torch_model_forward.1} parent=1 // pred_fallthru
      _
    // Predicated region
    $region14: #{torch_model_forward.1} parent=1 // pred_check
      _
    $region15: #{torch_model_forward.1} parent=1 // pred_check_branch
      %24 = sbr.rel (0) target = $region17
    $region16: #{torch_model_forward.1} parent=1 // pred_region
      _
    $region17: #{torch_model_forward.1} parent=1 // pred_fallthru
      _
    %v26 = vld [vmem:[%s2] sm:$0xff]
    %v27 = vld [vmem:[%s2 + $0x8] sm:$0xff]
    %v28 = vld [vmem:[%s2 + $0x10] sm:$0xff]
    %v29 = vld [vmem:[%s2 + $0x18] sm:$0xff]
    %v30 = vld [vmem:[%s2 + $0x20] sm:$0xff]
    %v31 = vld [vmem:[%s2 + $0x28] sm:$0xff]
    %v32 = vld [vmem:[%s2 + $0x30] sm:$0xff]
    %v33 = vld [vmem:[%s2 + $0x38] sm:$0xff]
    %v34 = vld [vmem:[%s2 + $0x40] sm:$0xff]
    %v35 = vld [vmem:[%s2 + $0x48] sm:$0xff]
    %v36 = vld [vmem:[%s2 + $0x50] sm:$0xff]
    %v37 = vld [vmem:[%s2 + $0x58] sm:$0xff]
    %v38 = vld [vmem:[%s2 + $0x60] sm:$0xff]
    %v39 = vld [vmem:[%s2 + $0x68] sm:$0xff]
    %v40 = vld [vmem:[%s2 + $0x70] sm:$0xff]
    %v41 = vld [vmem:[%s2 + $0x78] sm:$0xff]
    %v42 = vld [vmem:[%s2 + $0x80] sm:$0xff]
    %v43 = vld [vmem:[%s2 + $0x88] sm:$0xff]
    %v44 = vld [vmem:[%s2 + $0x90] sm:$0xff]
    %v45 = vld [vmem:[%s2 + $0x98] sm:$0xff]
    %v46 = vld [vmem:[%s2 + $0xa0] sm:$0xff]
    %v47 = vld [vmem:[%s2 + $0xa8] sm:$0xff]
    %v48 = vld [vmem:[%s2 + $0xb0] sm:$0xff]
    %v49 = vld [vmem:[%s2 + $0xb8] sm:$0xff]
    %v50 = vld [vmem:[%s2 + $0xc0] sm:$0xff]
    %v51 = vld [vmem:[%s2 + $0xc8] sm:$0xff]
    %v52 = vld [vmem:[%s2 + $0xd0] sm:$0xff]
    %v53 = vld [vmem:[%s2 + $0xd8] sm:$0xff]
    %v54 = vld [vmem:[%s2 + $0xe0] sm:$0xff]
    %v55 = vld [vmem:[%s2 + $0xe8] sm:$0xff]
    %v56 = vld [vmem:[%s2 + $0xf0] sm:$0xff]
    %v57 = vld [vmem:[%s2 + $0xf8] sm:$0xff]
    %s58 = sld [smem:[#allocation3]]
    %s59 = sshra.s32 %s58, 3
    %s60 = sand.u32 %s58, 7
    %s61 = sshra.s32 %s58, 3
    %s62 = sand.u32 %s58, 7
    %s63 = smul.u32 %s59, 4
    %s64 = smul.u32 %s63, 8
    %s65 = sadd.s32 %s64, %s62
    %s66 = scalar_lea.vmem %s1, %s65
    %v67 = vld [vmem:[%s66] ss:$8 sm:$0xf]
    %s68 = sld [smem:[#allocation3 + $0x80]]
    %s69 = sshra.s32 %s68, 3
    %s70 = sand.u32 %s68, 7
    %s71 = sshra.s32 %s68, 3
    %s72 = sand.u32 %s68, 7
    %s73 = smul.u32 %s69, 4
    %s74 = smul.u32 %s73, 8
    %s75 = sadd.s32 %s74, %s72
    %s76 = scalar_lea.vmem %s1, %s75
    %v77 = vld [vmem:[%s76] ss:$8 sm:$0xf]
    %v79 = vlaneseq
    %v80 = vshrl.u32 %v79, 7
    %v81 = vsub.s32 0, %v80
    %v82 = vrot.slane %v67, %v81
    %v83 = vlaneseq
    %v84 = vshrl.u32 %v83, 7
    %v85 = vsub.s32 1, %v84
    %v86 = vrot.slane %v67, %v85
    %v87 = vlaneseq
    %v88 = vshrl.u32 %v87, 7
    %v89 = vsub.s32 2, %v88
    %v90 = vrot.slane %v67, %v89
    %v91 = vlaneseq
    %v92 = vshrl.u32 %v91, 7
    %v93 = vsub.s32 3, %v92
    %v94 = vrot.slane %v67, %v93
    %v100 = vlaneseq
    %v101 = vshrl.u32 %v100, 7
    %v102 = vsub.s32 0, %v101
    %v103 = vrot.slane %v77, %v102
    %v104 = vlaneseq
    %v105 = vshrl.u32 %v104, 7
    %v106 = vsub.s32 1, %v105
    %v107 = vrot.slane %v77, %v106
    %v108 = vlaneseq
    %v109 = vshrl.u32 %v108, 7
    %v110 = vsub.s32 2, %v109
    %v111 = vrot.slane %v77, %v110
    %v112 = vlaneseq
    %v113 = vshrl.u32 %v112, 7
    %v114 = vsub.s32 3, %v113
    %v115 = vrot.slane %v77, %v114
    %vm120 = vcmask 1040384
    %v121 = vsel %vm120, %v82, %v103
    %v122 = vsel %vm120, %v86, %v107
    %v123 = vsel %vm120, %v90, %v111
    %v124 = vsel %vm120, %v94, %v115
    %v157 = vunpack.c.l.b16 %v26
    %v158 = vunpack.c.h.b16 %v26
    %v159 = vunpack.c.l.b16 %v27
    %v160 = vunpack.c.h.b16 %v27
    %v161 = vunpack.c.l.b16 %v28
    %v162 = vunpack.c.h.b16 %v28
    %v163 = vunpack.c.l.b16 %v29
    %v164 = vunpack.c.h.b16 %v29
    %v165 = vunpack.c.l.b16 %v30
    %v166 = vunpack.c.h.b16 %v30
    %v167 = vunpack.c.l.b16 %v31
    %v168 = vunpack.c.h.b16 %v31
    %v169 = vunpack.c.l.b16 %v32
    %v170 = vunpack.c.h.b16 %v32
    %v171 = vunpack.c.l.b16 %v33
    %v172 = vunpack.c.h.b16 %v33
    %v173 = vunpack.c.l.b16 %v34
    %v174 = vunpack.c.h.b16 %v34
    %v175 = vunpack.c.l.b16 %v35
    %v176 = vunpack.c.h.b16 %v35
    %v177 = vunpack.c.l.b16 %v36
    %v178 = vunpack.c.h.b16 %v36
    %v179 = vunpack.c.l.b16 %v37
    %v180 = vunpack.c.h.b16 %v37
    %v181 = vunpack.c.l.b16 %v38
    %v182 = vunpack.c.h.b16 %v38
    %v183 = vunpack.c.l.b16 %v39
    %v184 = vunpack.c.h.b16 %v39
    %v185 = vunpack.c.l.b16 %v40
    %v186 = vunpack.c.h.b16 %v40
    %v187 = vunpack.c.l.b16 %v41
    %v188 = vunpack.c.h.b16 %v41
    %v189 = vunpack.c.l.b16 %v42
    %v190 = vunpack.c.h.b16 %v42
    %v191 = vunpack.c.l.b16 %v43
    %v192 = vunpack.c.h.b16 %v43
    %v193 = vunpack.c.l.b16 %v44
    %v194 = vunpack.c.h.b16 %v44
    %v195 = vunpack.c.l.b16 %v45
    %v196 = vunpack.c.h.b16 %v45
    %v197 = vunpack.c.l.b16 %v46
    %v198 = vunpack.c.h.b16 %v46
    %v199 = vunpack.c.l.b16 %v47
    %v200 = vunpack.c.h.b16 %v47
    %v201 = vunpack.c.l.b16 %v48
    %v202 = vunpack.c.h.b16 %v48
    %v203 = vunpack.c.l.b16 %v49
    %v204 = vunpack.c.h.b16 %v49
    %v205 = vunpack.c.l.b16 %v50
    %v206 = vunpack.c.h.b16 %v50
    %v207 = vunpack.c.l.b16 %v51
    %v208 = vunpack.c.h.b16 %v51
    %v209 = vunpack.c.l.b16 %v52
    %v210 = vunpack.c.h.b16 %v52
    %v211 = vunpack.c.l.b16 %v53
    %v212 = vunpack.c.h.b16 %v53
    %v213 = vunpack.c.l.b16 %v54
    %v214 = vunpack.c.h.b16 %v54
    %v215 = vunpack.c.l.b16 %v55
    %v216 = vunpack.c.h.b16 %v55
    %v217 = vunpack.c.l.b16 %v56
    %v218 = vunpack.c.h.b16 %v56
    %v219 = vunpack.c.l.b16 %v57
    %v220 = vunpack.c.h.b16 %v57
    %v221 = vpack.c.b16 %v161, %v157
    %v222 = vpack.c.b16 %v162, %v158
    %v223 = vpack.c.b16 %v163, %v159
    %v224 = vpack.c.b16 %v164, %v160
    %v225 = vpack.c.b16 %v169, %v165
    %v226 = vpack.c.b16 %v170, %v166
    %v227 = vpack.c.b16 %v171, %v167
    %v228 = vpack.c.b16 %v172, %v168
    %v229 = vpack.c.b16 %v177, %v173
    %v230 = vpack.c.b16 %v178, %v174
    %v231 = vpack.c.b16 %v179, %v175
    %v232 = vpack.c.b16 %v180, %v176
    %v233 = vpack.c.b16 %v185, %v181
    %v234 = vpack.c.b16 %v186, %v182
    %v235 = vpack.c.b16 %v187, %v183
    %v236 = vpack.c.b16 %v188, %v184
    %v237 = vpack.c.b16 %v193, %v189
    %v238 = vpack.c.b16 %v194, %v190
    %v239 = vpack.c.b16 %v195, %v191
    %v240 = vpack.c.b16 %v196, %v192
    %v241 = vpack.c.b16 %v201, %v197
    %v242 = vpack.c.b16 %v202, %v198
    %v243 = vpack.c.b16 %v203, %v199
    %v244 = vpack.c.b16 %v204, %v200
    %v245 = vpack.c.b16 %v209, %v205
    %v246 = vpack.c.b16 %v210, %v206
    %v247 = vpack.c.b16 %v211, %v207
    %v248 = vpack.c.b16 %v212, %v208
    %v249 = vpack.c.b16 %v217, %v213
    %v250 = vpack.c.b16 %v218, %v214
    %v251 = vpack.c.b16 %v219, %v215
    %v252 = vpack.c.b16 %v220, %v216
    %285 = vmatprep.subr.bf16.mxu0 %v250
    %286 = vmatpush1.bf16.msra.mxu0 %v249
    %287 = vmatprep.subr.bf16.mxu0 %v246
    %288 = vmatpush1.bf16.msra.mxu0 %v245
    %289 = vmatprep.subr.bf16.mxu0 %v242
    %290 = vmatpush1.bf16.msra.mxu0 %v241
    %291 = vmatprep.subr.bf16.mxu0 %v238
    %292 = vmatpush1.bf16.msra.mxu0 %v237
    %293 = vmatprep.subr.bf16.mxu0 %v234
    %294 = vmatpush1.bf16.msra.mxu0 %v233
    %295 = vmatprep.subr.bf16.mxu0 %v230
    %296 = vmatpush1.bf16.msra.mxu0 %v229
    %297 = vmatprep.subr.bf16.mxu0 %v226
    %298 = vmatpush1.bf16.msra.mxu0 %v225
    %299 = vmatprep.subr.bf16.mxu0 %v222
    %300 = vmatpush1.bf16.msra.mxu0 %v221
    %301 = vmatprep.subr.bf16.mxu0 0
    %302 = vmatpush2.bf16.msra.mxu0 0
    %303 = vmatprep.subr.bf16.mxu0 0
    %304 = vmatpush2.bf16.msra.mxu0 0
    %305 = vmatprep.subr.bf16.mxu0 0
    %306 = vmatpush2.bf16.msra.mxu0 0
    %307 = vmatprep.subr.bf16.mxu0 0
    %308 = vmatpush2.bf16.msra.mxu0 0
    %309 = vmatprep.subr.bf16.mxu0 0
    %310 = vmatpush2.bf16.msra.mxu0 0
    %311 = vmatprep.subr.bf16.mxu0 0
    %312 = vmatpush2.bf16.msra.mxu0 0
    %313 = vmatprep.subr.bf16.mxu0 0
    %314 = vmatpush2.bf16.msra.mxu0 0
    %315 = vmatprep.subr.bf16.mxu0 0
    %316 = vmatpush2.bf16.msra.mxu0 0
    %317 = vmatprep.mubr.bf16.mxu0 0
    %318 = vmatmul.mubr.bf16.gmra.mxu0 0
    %v319 = vpop.f32.mrf.mxu0
    %v320 = vadd.f32 0.0, %v319
    %v321 = vpop.f32.mrf.mxu0
    %v322 = vadd.f32 0.0, %v321
    %v323 = vpop.f32.mrf.mxu0
    %v324 = vpop.f32.mrf.mxu0
    %325 = vdwg.mxu0
    %326 = vmatprep.subr.bf16.mxu0 %v252
    %327 = vmatpush1.bf16.msra.mxu0 %v251
    %328 = vmatprep.subr.bf16.mxu0 %v248
    %329 = vmatpush1.bf16.msra.mxu0 %v247
    %330 = vmatprep.subr.bf16.mxu0 %v244
    %331 = vmatpush1.bf16.msra.mxu0 %v243
    %332 = vmatprep.subr.bf16.mxu0 %v240
    %333 = vmatpush1.bf16.msra.mxu0 %v239
    %334 = vmatprep.subr.bf16.mxu0 %v236
    %335 = vmatpush1.bf16.msra.mxu0 %v235
    %336 = vmatprep.subr.bf16.mxu0 %v232
    %337 = vmatpush1.bf16.msra.mxu0 %v231
    %338 = vmatprep.subr.bf16.mxu0 %v228
    %339 = vmatpush1.bf16.msra.mxu0 %v227
    %340 = vmatprep.subr.bf16.mxu0 %v224
    %341 = vmatpush1.bf16.msra.mxu0 %v223
    %342 = vmatprep.subr.bf16.mxu0 0
    %343 = vmatpush2.bf16.msra.mxu0 0
    %344 = vmatprep.subr.bf16.mxu0 0
    %345 = vmatpush2.bf16.msra.mxu0 0
    %346 = vmatprep.subr.bf16.mxu0 0
    %347 = vmatpush2.bf16.msra.mxu0 0
    %348 = vmatprep.subr.bf16.mxu0 0
    %349 = vmatpush2.bf16.msra.mxu0 0
    %350 = vmatprep.subr.bf16.mxu0 0
    %351 = vmatpush2.bf16.msra.mxu0 0
    %352 = vmatprep.subr.bf16.mxu0 0
    %353 = vmatpush2.bf16.msra.mxu0 0
    %354 = vmatprep.subr.bf16.mxu0 0
    %355 = vmatpush2.bf16.msra.mxu0 0
    %356 = vmatprep.subr.bf16.mxu0 0
    %357 = vmatpush2.bf16.msra.mxu0 0
    %358 = vmatprep.mubr.bf16.mxu0 0
    %359 = vmatmul.mubr.bf16.gmra.mxu0 0
    %v360 = vpop.f32.mrf.mxu0
    %v361 = vadd.f32 0.0, %v360
    %v362 = vpop.f32.mrf.mxu0
    %v363 = vadd.f32 0.0, %v362
    %v364 = vpop.f32.mrf.mxu0
    %v365 = vpop.f32.mrf.mxu0
    %366 = vdwg.mxu0
    %v367 = vadd.f32 %v121, %v320
    %v368 = vadd.f32 %v122, %v322
    %v369 = vadd.f32 %v123, %v361
    %v370 = vadd.f32 %v124, %v363
    %v371 = vxor.u32 %v367, 2147483648
    %v372 = vmul.f32 %v371, 1.442695
    %v373 = vpow.pop %v372
    %v374 = vadd.f32 %v373, 1.0
    %v375 = vrcp.pop %v374
    %v376 = vmul.f32 1.0, %v375
    %v377 = vxor.u32 %v368, 2147483648
    %v378 = vmul.f32 %v377, 1.442695
    %v379 = vpow.pop %v378
    %v380 = vadd.f32 %v379, 1.0
    %v381 = vrcp.pop %v380
    %v382 = vmul.f32 1.0, %v381
    %v383 = vtanh.pop %v369
    %v384 = vxor.u32 %v370, 2147483648
    %v385 = vmul.f32 %v384, 1.442695
    %v386 = vpow.pop %v385
    %v387 = vadd.f32 %v386, 1.0
    %v388 = vrcp.pop %v387
    %v389 = vmul.f32 1.0, %v388
    %v390 = vmul.f32 %v382, 0.0
    %v391 = vmul.f32 %v376, %v383
    %v392 = vadd.f32 %v390, %v391
    %v393 = vtanh.pop %v392
    %v394 = vmul.f32 %v389, %v393
    %s395 = sld [smem:[#allocation3 + $0x1]]
    %s396 = sshra.s32 %s395, 3
    %s397 = sand.u32 %s395, 7
    %s398 = sshra.s32 %s395, 3
    %s399 = sand.u32 %s395, 7
    %s400 = smul.u32 %s396, 4
    %s401 = smul.u32 %s400, 8
    %s402 = sadd.s32 %s401, %s399
    %s403 = scalar_lea.vmem %s1, %s402
    %v404 = vld [vmem:[%s403] ss:$8 sm:$0xf]
    %s405 = sld [smem:[#allocation3 + $0x81]]
    %s406 = sshra.s32 %s405, 3
    %s407 = sand.u32 %s405, 7
    %s408 = sshra.s32 %s405, 3
    %s409 = sand.u32 %s405, 7
    %s410 = smul.u32 %s406, 4
    %s411 = smul.u32 %s410, 8
    %s412 = sadd.s32 %s411, %s409
    %s413 = scalar_lea.vmem %s1, %s412
    %v414 = vld [vmem:[%s413] ss:$8 sm:$0xf]
    %v416 = vlaneseq
    %v417 = vshrl.u32 %v416, 7
    %v418 = vsub.s32 0, %v417
    %v419 = vrot.slane %v404, %v418
    %v420 = vlaneseq
    %v421 = vshrl.u32 %v420, 7
    %v422 = vsub.s32 1, %v421
    %v423 = vrot.slane %v404, %v422
    %v424 = vlaneseq
    %v425 = vshrl.u32 %v424, 7
    %v426 = vsub.s32 2, %v425
    %v427 = vrot.slane %v404, %v426
    %v428 = vlaneseq
    %v429 = vshrl.u32 %v428, 7
    %v430 = vsub.s32 3, %v429
    %v431 = vrot.slane %v404, %v430
    %v437 = vlaneseq
    %v438 = vshrl.u32 %v437, 7
    %v439 = vsub.s32 0, %v438
    %v440 = vrot.slane %v414, %v439
    %v441 = vlaneseq
    %v442 = vshrl.u32 %v441, 7
    %v443 = vsub.s32 1, %v442
    %v444 = vrot.slane %v414, %v443
    %v445 = vlaneseq
    %v446 = vshrl.u32 %v445, 7
    %v447 = vsub.s32 2, %v446
    %v448 = vrot.slane %v414, %v447
    %v449 = vlaneseq
    %v450 = vshrl.u32 %v449, 7
    %v451 = vsub.s32 3, %v450
    %v452 = vrot.slane %v414, %v451
    %v457 = vsel %vm120, %v419, %v440
    %v458 = vsel %vm120, %v423, %v444
    %v459 = vsel %vm120, %v427, %v448
    %v460 = vsel %vm120, %v431, %v452
    %v461 = vpack.c.bf16 %v394, %v394
    %462 = vmatprep.subr.bf16.mxu0 %v250
    %463 = vmatpush1.bf16.msra.mxu0 %v249
    %464 = vmatprep.subr.bf16.mxu0 %v246
    %465 = vmatpush1.bf16.msra.mxu0 %v245
    %466 = vmatprep.subr.bf16.mxu0 %v242
    %467 = vmatpush1.bf16.msra.mxu0 %v241
    %468 = vmatprep.subr.bf16.mxu0 %v238
    %469 = vmatpush1.bf16.msra.mxu0 %v237
    %470 = vmatprep.subr.bf16.mxu0 %v234
    %471 = vmatpush1.bf16.msra.mxu0 %v233
    %472 = vmatprep.subr.bf16.mxu0 %v230
    %473 = vmatpush1.bf16.msra.mxu0 %v229
    %474 = vmatprep.subr.bf16.mxu0 %v226
    %475 = vmatpush1.bf16.msra.mxu0 %v225
    %476 = vmatprep.subr.bf16.mxu0 %v222
    %477 = vmatpush1.bf16.msra.mxu0 %v221
    %478 = vmatprep.subr.bf16.mxu0 0
    %479 = vmatpush2.bf16.msra.mxu0 0
    %480 = vmatprep.subr.bf16.mxu0 0
    %481 = vmatpush2.bf16.msra.mxu0 0
    %482 = vmatprep.subr.bf16.mxu0 0
    %483 = vmatpush2.bf16.msra.mxu0 0
    %484 = vmatprep.subr.bf16.mxu0 0
    %485 = vmatpush2.bf16.msra.mxu0 0
    %486 = vmatprep.subr.bf16.mxu0 0
    %487 = vmatpush2.bf16.msra.mxu0 0
    %488 = vmatprep.subr.bf16.mxu0 0
    %489 = vmatpush2.bf16.msra.mxu0 0
    %490 = vmatprep.subr.bf16.mxu0 0
    %491 = vmatpush2.bf16.msra.mxu0 0
    %492 = vmatprep.subr.bf16.mxu0 0
    %493 = vmatpush2.bf16.msra.mxu0 0
    %494 = vmatprep.mubr.bf16.mxu0 0
    %495 = vmatmul.mubr.bf16.gmra.mxu0 %v461
    %v496 = vpop.f32.mrf.mxu0
    %v497 = vadd.f32 0.0, %v496
    %v498 = vpop.f32.mrf.mxu0
    %v499 = vadd.f32 0.0, %v498
    %v500 = vpop.f32.mrf.mxu0
    %v501 = vpop.f32.mrf.mxu0
    %502 = vdwg.mxu0
    %503 = vmatprep.subr.bf16.mxu0 %v252
    %504 = vmatpush1.bf16.msra.mxu0 %v251
    %505 = vmatprep.subr.bf16.mxu0 %v248
    %506 = vmatpush1.bf16.msra.mxu0 %v247
    %507 = vmatprep.subr.bf16.mxu0 %v244
    %508 = vmatpush1.bf16.msra.mxu0 %v243
    %509 = vmatprep.subr.bf16.mxu0 %v240
    %510 = vmatpush1.bf16.msra.mxu0 %v239
    %511 = vmatprep.subr.bf16.mxu0 %v236
    %512 = vmatpush1.bf16.msra.mxu0 %v235
    %513 = vmatprep.subr.bf16.mxu0 %v232
    %514 = vmatpush1.bf16.msra.mxu0 %v231
    %515 = vmatprep.subr.bf16.mxu0 %v228
    %516 = vmatpush1.bf16.msra.mxu0 %v227
    %517 = vmatprep.subr.bf16.mxu0 %v224
    %518 = vmatpush1.bf16.msra.mxu0 %v223
    %519 = vmatprep.subr.bf16.mxu0 0
    %520 = vmatpush2.bf16.msra.mxu0 0
    %521 = vmatprep.subr.bf16.mxu0 0
    %522 = vmatpush2.bf16.msra.mxu0 0
    %523 = vmatprep.subr.bf16.mxu0 0
    %524 = vmatpush2.bf16.msra.mxu0 0
    %525 = vmatprep.subr.bf16.mxu0 0
    %526 = vmatpush2.bf16.msra.mxu0 0
    %527 = vmatprep.subr.bf16.mxu0 0
    %528 = vmatpush2.bf16.msra.mxu0 0
    %529 = vmatprep.subr.bf16.mxu0 0
    %530 = vmatpush2.bf16.msra.mxu0 0
    %531 = vmatprep.subr.bf16.mxu0 0
    %532 = vmatpush2.bf16.msra.mxu0 0
    %533 = vmatprep.subr.bf16.mxu0 0
    %534 = vmatpush2.bf16.msra.mxu0 0
    %535 = vmatprep.mubr.bf16.mxu0 0
    %536 = vmatmul.mubr.bf16.gmra.mxu0 %v461
    %v537 = vpop.f32.mrf.mxu0
    %v538 = vadd.f32 0.0, %v537
    %v539 = vpop.f32.mrf.mxu0
    %v540 = vadd.f32 0.0, %v539
    %v541 = vpop.f32.mrf.mxu0
    %v542 = vpop.f32.mrf.mxu0
    %543 = vdwg.mxu0
    %v544 = vadd.f32 %v457, %v497
    %v545 = vadd.f32 %v458, %v499
    %v546 = vadd.f32 %v459, %v538
    %v547 = vadd.f32 %v460, %v540
    %v548 = vxor.u32 %v544, 2147483648
    %v549 = vmul.f32 %v548, 1.442695
    %v550 = vpow.pop %v549
    %v551 = vadd.f32 %v550, 1.0
    %v552 = vrcp.pop %v551
    %v553 = vmul.f32 1.0, %v552
    %v554 = vxor.u32 %v545, 2147483648
    %v555 = vmul.f32 %v554, 1.442695
    %v556 = vpow.pop %v555
    %v557 = vadd.f32 %v556, 1.0
    %v558 = vrcp.pop %v557
    %v559 = vmul.f32 1.0, %v558
    %v560 = vtanh.pop %v546
    %v561 = vxor.u32 %v547, 2147483648
    %v562 = vmul.f32 %v561, 1.442695
    %v563 = vpow.pop %v562
    %v564 = vadd.f32 %v563, 1.0
    %v565 = vrcp.pop %v564
    %v566 = vmul.f32 1.0, %v565
    %v567 = vmul.f32 %v559, %v392
    %v568 = vmul.f32 %v553, %v560
    %v569 = vadd.f32 %v567, %v568
    %v570 = vtanh.pop %v569
    %v571 = vmul.f32 %v566, %v570
    %s572 = sld [smem:[#allocation3 + $0x2]]
    %s573 = sshra.s32 %s572, 3
    %s574 = sand.u32 %s572, 7
    %s575 = sshra.s32 %s572, 3
    %s576 = sand.u32 %s572, 7
    %s577 = smul.u32 %s573, 4
    %s578 = smul.u32 %s577, 8
    %s579 = sadd.s32 %s578, %s576
    %s580 = scalar_lea.vmem %s1, %s579
    %v581 = vld [vmem:[%s580] ss:$8 sm:$0xf]
    %s582 = sld [smem:[#allocation3 + $0x82]]
    %s583 = sshra.s32 %s582, 3
    %s584 = sand.u32 %s582, 7
    %s585 = sshra.s32 %s582, 3
    %s586 = sand.u32 %s582, 7
    %s587 = smul.u32 %s583, 4
    %s588 = smul.u32 %s587, 8
    %s589 = sadd.s32 %s588, %s586
    %s590 = scalar_lea.vmem %s1, %s589
    %v591 = vld [vmem:[%s590] ss:$8 sm:$0xf]
    %v593 = vlaneseq
    %v594 = vshrl.u32 %v593, 7
    %v595 = vsub.s32 0, %v594
    %v596 = vrot.slane %v581, %v595
    %v597 = vlaneseq
    %v598 = vshrl.u32 %v597, 7
    %v599 = vsub.s32 1, %v598
    %v600 = vrot.slane %v581, %v599
    %v601 = vlaneseq
    %v602 = vshrl.u32 %v601, 7
    %v603 = vsub.s32 2, %v602
    %v604 = vrot.slane %v581, %v603
    %v605 = vlaneseq
    %v606 = vshrl.u32 %v605, 7
    %v607 = vsub.s32 3, %v606
    %v608 = vrot.slane %v581, %v607
    %v614 = vlaneseq
    %v615 = vshrl.u32 %v614, 7
    %v616 = vsub.s32 0, %v615
    %v617 = vrot.slane %v591, %v616
    %v618 = vlaneseq
    %v619 = vshrl.u32 %v618, 7
    %v620 = vsub.s32 1, %v619
    %v621 = vrot.slane %v591, %v620
    %v622 = vlaneseq
    %v623 = vshrl.u32 %v622, 7
    %v624 = vsub.s32 2, %v623
    %v625 = vrot.slane %v591, %v624
    %v626 = vlaneseq
    %v627 = vshrl.u32 %v626, 7
    %v628 = vsub.s32 3, %v627
    %v629 = vrot.slane %v591, %v628
    %v634 = vsel %vm120, %v596, %v617
    %v635 = vsel %vm120, %v600, %v621
    %v636 = vsel %vm120, %v604, %v625
    %v637 = vsel %vm120, %v608, %v629
    %v638 = vpack.c.bf16 %v571, %v571
    %639 = vmatprep.subr.bf16.mxu0 %v250
    %640 = vmatpush1.bf16.msra.mxu0 %v249
    %641 = vmatprep.subr.bf16.mxu0 %v246
    %642 = vmatpush1.bf16.msra.mxu0 %v245
    %643 = vmatprep.subr.bf16.mxu0 %v242
    %644 = vmatpush1.bf16.msra.mxu0 %v241
    %645 = vmatprep.subr.bf16.mxu0 %v238
    %646 = vmatpush1.bf16.msra.mxu0 %v237
    %647 = vmatprep.subr.bf16.mxu0 %v234
    %648 = vmatpush1.bf16.msra.mxu0 %v233
    %649 = vmatprep.subr.bf16.mxu0 %v230
    %650 = vmatpush1.bf16.msra.mxu0 %v229
    %651 = vmatprep.subr.bf16.mxu0 %v226
    %652 = vmatpush1.bf16.msra.mxu0 %v225
    %653 = vmatprep.subr.bf16.mxu0 %v222
    %654 = vmatpush1.bf16.msra.mxu0 %v221
    %655 = vmatprep.subr.bf16.mxu0 0
    %656 = vmatpush2.bf16.msra.mxu0 0
    %657 = vmatprep.subr.bf16.mxu0 0
    %658 = vmatpush2.bf16.msra.mxu0 0
    %659 = vmatprep.subr.bf16.mxu0 0
    %660 = vmatpush2.bf16.msra.mxu0 0
    %661 = vmatprep.subr.bf16.mxu0 0
    %662 = vmatpush2.bf16.msra.mxu0 0
    %663 = vmatprep.subr.bf16.mxu0 0
    %664 = vmatpush2.bf16.msra.mxu0 0
    %665 = vmatprep.subr.bf16.mxu0 0
    %666 = vmatpush2.bf16.msra.mxu0 0
    %667 = vmatprep.subr.bf16.mxu0 0
    %668 = vmatpush2.bf16.msra.mxu0 0
    %669 = vmatprep.subr.bf16.mxu0 0
    %670 = vmatpush2.bf16.msra.mxu0 0
    %671 = vmatprep.mubr.bf16.mxu0 0
    %672 = vmatmul.mubr.bf16.gmra.mxu0 %v638
    %v673 = vpop.f32.mrf.mxu0
    %v674 = vadd.f32 0.0, %v673
    %v675 = vpop.f32.mrf.mxu0
    %v676 = vadd.f32 0.0, %v675
    %v677 = vpop.f32.mrf.mxu0
    %v678 = vpop.f32.mrf.mxu0
    %679 = vdwg.mxu0
    %680 = vmatprep.subr.bf16.mxu0 %v252
    %681 = vmatpush1.bf16.msra.mxu0 %v251
    %682 = vmatprep.subr.bf16.mxu0 %v248
    %683 = vmatpush1.bf16.msra.mxu0 %v247
    %684 = vmatprep.subr.bf16.mxu0 %v244
    %685 = vmatpush1.bf16.msra.mxu0 %v243
    %686 = vmatprep.subr.bf16.mxu0 %v240
    %687 = vmatpush1.bf16.msra.mxu0 %v239
    %688 = vmatprep.subr.bf16.mxu0 %v236
    %689 = vmatpush1.bf16.msra.mxu0 %v235
    %690 = vmatprep.subr.bf16.mxu0 %v232
    %691 = vmatpush1.bf16.msra.mxu0 %v231
    %692 = vmatprep.subr.bf16.mxu0 %v228
    %693 = vmatpush1.bf16.msra.mxu0 %v227
    %694 = vmatprep.subr.bf16.mxu0 %v224
    %695 = vmatpush1.bf16.msra.mxu0 %v223
    %696 = vmatprep.subr.bf16.mxu0 0
    %697 = vmatpush2.bf16.msra.mxu0 0
    %698 = vmatprep.subr.bf16.mxu0 0
    %699 = vmatpush2.bf16.msra.mxu0 0
    %700 = vmatprep.subr.bf16.mxu0 0
    %701 = vmatpush2.bf16.msra.mxu0 0
    %702 = vmatprep.subr.bf16.mxu0 0
    %703 = vmatpush2.bf16.msra.mxu0 0
    %704 = vmatprep.subr.bf16.mxu0 0
    %705 = vmatpush2.bf16.msra.mxu0 0
    %706 = vmatprep.subr.bf16.mxu0 0
    %707 = vmatpush2.bf16.msra.mxu0 0
    %708 = vmatprep.subr.bf16.mxu0 0
    %709 = vmatpush2.bf16.msra.mxu0 0
    %710 = vmatprep.subr.bf16.mxu0 0
    %711 = vmatpush2.bf16.msra.mxu0 0
    %712 = vmatprep.mubr.bf16.mxu0 0
    %713 = vmatmul.mubr.bf16.gmra.mxu0 %v638
    %v714 = vpop.f32.mrf.mxu0
    %v715 = vadd.f32 0.0, %v714
    %v716 = vpop.f32.mrf.mxu0
    %v717 = vadd.f32 0.0, %v716
    %v718 = vpop.f32.mrf.mxu0
    %v719 = vpop.f32.mrf.mxu0
    %720 = vdwg.mxu0
    %v721 = vadd.f32 %v634, %v674
    %v722 = vadd.f32 %v635, %v676
    %v723 = vadd.f32 %v636, %v715
    %v724 = vadd.f32 %v637, %v717
    %v725 = vxor.u32 %v721, 2147483648
    %v726 = vmul.f32 %v725, 1.442695
    %v727 = vpow.pop %v726
    %v728 = vadd.f32 %v727, 1.0
    %v729 = vrcp.pop %v728
    %v730 = vmul.f32 1.0, %v729
    %v731 = vxor.u32 %v722, 2147483648
    %v732 = vmul.f32 %v731, 1.442695
    %v733 = vpow.pop %v732
    %v734 = vadd.f32 %v733, 1.0
    %v735 = vrcp.pop %v734
    %v736 = vmul.f32 1.0, %v735
    %v737 = vtanh.pop %v723
    %v738 = vxor.u32 %v724, 2147483648
    %v739 = vmul.f32 %v738, 1.442695
    %v740 = vpow.pop %v739
    %v741 = vadd.f32 %v740, 1.0
    %v742 = vrcp.pop %v741
    %v743 = vmul.f32 1.0, %v742
    %v744 = vmul.f32 %v736, %v569
    %v745 = vmul.f32 %v730, %v737
    %v746 = vadd.f32 %v744, %v745
    %v747 = vtanh.pop %v746
    %v748 = vmul.f32 %v743, %v747
    %s749 = sld [smem:[#allocation3 + $0x3]]
    %s750 = sshra.s32 %s749, 3
    %s751 = sand.u32 %s749, 7
    %s752 = sshra.s32 %s749, 3
    %s753 = sand.u32 %s749, 7
    %s754 = smul.u32 %s750, 4
    %s755 = smul.u32 %s754, 8
    %s756 = sadd.s32 %s755, %s753
    %s757 = scalar_lea.vmem %s1, %s756
    %v758 = vld [vmem:[%s757] ss:$8 sm:$0xf]
    %s759 = sld [smem:[#allocation3 + $0x83]]
    %s760 = sshra.s32 %s759, 3
    %s761 = sand.u32 %s759, 7
    %s762 = sshra.s32 %s759, 3
    %s763 = sand.u32 %s759, 7
    %s764 = smul.u32 %s760, 4
    %s765 = smul.u32 %s764, 8
    %s766 = sadd.s32 %s765, %s763
    %s767 = scalar_lea.vmem %s1, %s766
    %v768 = vld [vmem:[%s767] ss:$8 sm:$0xf]
    %v770 = vlaneseq
    %v771 = vshrl.u32 %v770, 7
    %v772 = vsub.s32 0, %v771
    %v773 = vrot.slane %v758, %v772
    %v774 = vlaneseq
    %v775 = vshrl.u32 %v774, 7
    %v776 = vsub.s32 1, %v775
    %v777 = vrot.slane %v758, %v776
    %v778 = vlaneseq
    %v779 = vshrl.u32 %v778, 7
    %v780 = vsub.s32 2, %v779
    %v781 = vrot.slane %v758, %v780
    %v782 = vlaneseq
    %v783 = vshrl.u32 %v782, 7
    %v784 = vsub.s32 3, %v783
    %v785 = vrot.slane %v758, %v784
    %v791 = vlaneseq
    %v792 = vshrl.u32 %v791, 7
    %v793 = vsub.s32 0, %v792
    %v794 = vrot.slane %v768, %v793
    %v795 = vlaneseq
    %v796 = vshrl.u32 %v795, 7
    %v797 = vsub.s32 1, %v796
    %v798 = vrot.slane %v768, %v797
    %v799 = vlaneseq
    %v800 = vshrl.u32 %v799, 7
    %v801 = vsub.s32 2, %v800
    %v802 = vrot.slane %v768, %v801
    %v803 = vlaneseq
    %v804 = vshrl.u32 %v803, 7
    %v805 = vsub.s32 3, %v804
    %v806 = vrot.slane %v768, %v805
    %v811 = vsel %vm120, %v773, %v794
    %v812 = vsel %vm120, %v777, %v798
    %v813 = vsel %vm120, %v781, %v802
    %v814 = vsel %vm120, %v785, %v806
    %v815 = vpack.c.bf16 %v748, %v748
    %816 = vmatprep.subr.bf16.mxu0 %v250
    %817 = vmatpush1.bf16.msra.mxu0 %v249
    %818 = vmatprep.subr.bf16.mxu0 %v246
    %819 = vmatpush1.bf16.msra.mxu0 %v245
    %820 = vmatprep.subr.bf16.mxu0 %v242
    %821 = vmatpush1.bf16.msra.mxu0 %v241
    %822 = vmatprep.subr.bf16.mxu0 %v238
    %823 = vmatpush1.bf16.msra.mxu0 %v237
    %824 = vmatprep.subr.bf16.mxu0 %v234
    %825 = vmatpush1.bf16.msra.mxu0 %v233
    %826 = vmatprep.subr.bf16.mxu0 %v230
    %827 = vmatpush1.bf16.msra.mxu0 %v229
    %828 = vmatprep.subr.bf16.mxu0 %v226
    %829 = vmatpush1.bf16.msra.mxu0 %v225
    %830 = vmatprep.subr.bf16.mxu0 %v222
    %831 = vmatpush1.bf16.msra.mxu0 %v221
    %832 = vmatprep.subr.bf16.mxu0 0
    %833 = vmatpush2.bf16.msra.mxu0 0
    %834 = vmatprep.subr.bf16.mxu0 0
    %835 = vmatpush2.bf16.msra.mxu0 0
    %836 = vmatprep.subr.bf16.mxu0 0
    %837 = vmatpush2.bf16.msra.mxu0 0
    %838 = vmatprep.subr.bf16.mxu0 0
    %839 = vmatpush2.bf16.msra.mxu0 0
    %840 = vmatprep.subr.bf16.mxu0 0
    %841 = vmatpush2.bf16.msra.mxu0 0
    %842 = vmatprep.subr.bf16.mxu0 0
    %843 = vmatpush2.bf16.msra.mxu0 0
    %844 = vmatprep.subr.bf16.mxu0 0
    %845 = vmatpush2.bf16.msra.mxu0 0
    %846 = vmatprep.subr.bf16.mxu0 0
    %847 = vmatpush2.bf16.msra.mxu0 0
    %848 = vmatprep.mubr.bf16.mxu0 0
    %849 = vmatmul.mubr.bf16.gmra.mxu0 %v815
    %v850 = vpop.f32.mrf.mxu0
    %v851 = vadd.f32 0.0, %v850
    %v852 = vpop.f32.mrf.mxu0
    %v853 = vadd.f32 0.0, %v852
    %v854 = vpop.f32.mrf.mxu0
    %v855 = vpop.f32.mrf.mxu0
    %856 = vdwg.mxu0
    %857 = vmatprep.subr.bf16.mxu0 %v252
    %858 = vmatpush1.bf16.msra.mxu0 %v251
    %859 = vmatprep.subr.bf16.mxu0 %v248
    %860 = vmatpush1.bf16.msra.mxu0 %v247
    %861 = vmatprep.subr.bf16.mxu0 %v244
    %862 = vmatpush1.bf16.msra.mxu0 %v243
    %863 = vmatprep.subr.bf16.mxu0 %v240
    %864 = vmatpush1.bf16.msra.mxu0 %v239
    %865 = vmatprep.subr.bf16.mxu0 %v236
    %866 = vmatpush1.bf16.msra.mxu0 %v235
    %867 = vmatprep.subr.bf16.mxu0 %v232
    %868 = vmatpush1.bf16.msra.mxu0 %v231
    %869 = vmatprep.subr.bf16.mxu0 %v228
    %870 = vmatpush1.bf16.msra.mxu0 %v227
    %871 = vmatprep.subr.bf16.mxu0 %v224
    %872 = vmatpush1.bf16.msra.mxu0 %v223
    %873 = vmatprep.subr.bf16.mxu0 0
    %874 = vmatpush2.bf16.msra.mxu0 0
    %875 = vmatprep.subr.bf16.mxu0 0
    %876 = vmatpush2.bf16.msra.mxu0 0
    %877 = vmatprep.subr.bf16.mxu0 0
    %878 = vmatpush2.bf16.msra.mxu0 0
    %879 = vmatprep.subr.bf16.mxu0 0
    %880 = vmatpush2.bf16.msra.mxu0 0
    %881 = vmatprep.subr.bf16.mxu0 0
    %882 = vmatpush2.bf16.msra.mxu0 0
    %883 = vmatprep.subr.bf16.mxu0 0
    %884 = vmatpush2.bf16.msra.mxu0 0
    %885 = vmatprep.subr.bf16.mxu0 0
    %886 = vmatpush2.bf16.msra.mxu0 0
    %887 = vmatprep.subr.bf16.mxu0 0
    %888 = vmatpush2.bf16.msra.mxu0 0
    %889 = vmatprep.mubr.bf16.mxu0 0
    %890 = vmatmul.mubr.bf16.gmra.mxu0 %v815
    %v891 = vpop.f32.mrf.mxu0
    %v892 = vadd.f32 0.0, %v891
    %v893 = vpop.f32.mrf.mxu0
    %v894 = vadd.f32 0.0, %v893
    %v895 = vpop.f32.mrf.mxu0
    %v896 = vpop.f32.mrf.mxu0
    %897 = vdwg.mxu0
    %v898 = vadd.f32 %v811, %v851
    %v899 = vadd.f32 %v812, %v853
    %v900 = vadd.f32 %v813, %v892
    %v901 = vadd.f32 %v814, %v894
    %v902 = vxor.u32 %v898, 2147483648
    %v903 = vmul.f32 %v902, 1.442695
    %v904 = vpow.pop %v903
    %v905 = vadd.f32 %v904, 1.0
    %v906 = vrcp.pop %v905
    %v907 = vmul.f32 1.0, %v906
    %v908 = vxor.u32 %v899, 2147483648
    %v909 = vmul.f32 %v908, 1.442695
    %v910 = vpow.pop %v909
    %v911 = vadd.f32 %v910, 1.0
    %v912 = vrcp.pop %v911
    %v913 = vmul.f32 1.0, %v912
    %v914 = vtanh.pop %v900
    %v915 = vxor.u32 %v901, 2147483648
    %v916 = vmul.f32 %v915, 1.442695
    %v917 = vpow.pop %v916
    %v918 = vadd.f32 %v917, 1.0
    %v919 = vrcp.pop %v918
    %v920 = vmul.f32 1.0, %v919
    %v921 = vmul.f32 %v913, %v746
    %v922 = vmul.f32 %v907, %v914
    %v923 = vadd.f32 %v921, %v922
    %v924 = vtanh.pop %v923
    %v925 = vmul.f32 %v920, %v924
    %s926 = sld [smem:[#allocation3 + $0x4]]
    %s927 = sshra.s32 %s926, 3
    %s928 = sand.u32 %s926, 7
    %s929 = sshra.s32 %s926, 3
    %s930 = sand.u32 %s926, 7
    %s931 = smul.u32 %s927, 4
    %s932 = smul.u32 %s931, 8
    %s933 = sadd.s32 %s932, %s930
    %s934 = scalar_lea.vmem %s1, %s933
    %v935 = vld [vmem:[%s934] ss:$8 sm:$0xf]
    %s936 = sld [smem:[#allocation3 + $0x84]]
    %s937 = sshra.s32 %s936, 3
    %s938 = sand.u32 %s936, 7
    %s939 = sshra.s32 %s936, 3
    %s940 = sand.u32 %s936, 7
    %s941 = smul.u32 %s937, 4
    %s942 = smul.u32 %s941, 8
    %s943 = sadd.s32 %s942, %s940
    %s944 = scalar_lea.vmem %s1, %s943
    %v945 = vld [vmem:[%s944] ss:$8 sm:$0xf]
    %v947 = vlaneseq
    %v948 = vshrl.u32 %v947, 7
    %v949 = vsub.s32 0, %v948
    %v950 = vrot.slane %v935, %v949
    %v951 = vlaneseq
    %v952 = vshrl.u32 %v951, 7
    %v953 = vsub.s32 1, %v952
    %v954 = vrot.slane %v935, %v953
    %v955 = vlaneseq
    %v956 = vshrl.u32 %v955, 7
    %v957 = vsub.s32 2, %v956
    %v958 = vrot.slane %v935, %v957
    %v959 = vlaneseq
    %v960 = vshrl.u32 %v959, 7
    %v961 = vsub.s32 3, %v960
    %v962 = vrot.slane %v935, %v961
    %v968 = vlaneseq
    %v969 = vshrl.u32 %v968, 7
    %v970 = vsub.s32 0, %v969
    %v971 = vrot.slane %v945, %v970
    %v972 = vlaneseq
    %v973 = vshrl.u32 %v972, 7
    %v974 = vsub.s32 1, %v973
    %v975 = vrot.slane %v945, %v974
    %v976 = vlaneseq
    %v977 = vshrl.u32 %v976, 7
    %v978 = vsub.s32 2, %v977
    %v979 = vrot.slane %v945, %v978
    %v980 = vlaneseq
    %v981 = vshrl.u32 %v980, 7
    %v982 = vsub.s32 3, %v981
    %v983 = vrot.slane %v945, %v982
    %v988 = vsel %vm120, %v950, %v971
    %v989 = vsel %vm120, %v954, %v975
    %v990 = vsel %vm120, %v958, %v979
    %v991 = vsel %vm120, %v962, %v983
    %v992 = vpack.c.bf16 %v925, %v925
    %993 = vmatprep.subr.bf16.mxu0 %v250
    %994 = vmatpush1.bf16.msra.mxu0 %v249
    %995 = vmatprep.subr.bf16.mxu0 %v246
    %996 = vmatpush1.bf16.msra.mxu0 %v245
    %997 = vmatprep.subr.bf16.mxu0 %v242
    %998 = vmatpush1.bf16.msra.mxu0 %v241
    %999 = vmatprep.subr.bf16.mxu0 %v238
    %1000 = vmatpush1.bf16.msra.mxu0 %v237
    %1001 = vmatprep.subr.bf16.mxu0 %v234
    %1002 = vmatpush1.bf16.msra.mxu0 %v233
    %1003 = vmatprep.subr.bf16.mxu0 %v230
    %1004 = vmatpush1.bf16.msra.mxu0 %v229
    %1005 = vmatprep.subr.bf16.mxu0 %v226
    %1006 = vmatpush1.bf16.msra.mxu0 %v225
    %1007 = vmatprep.subr.bf16.mxu0 %v222
    %1008 = vmatpush1.bf16.msra.mxu0 %v221
    %1009 = vmatprep.subr.bf16.mxu0 0
    %1010 = vmatpush2.bf16.msra.mxu0 0
    %1011 = vmatprep.subr.bf16.mxu0 0
    %1012 = vmatpush2.bf16.msra.mxu0 0
    %1013 = vmatprep.subr.bf16.mxu0 0
    %1014 = vmatpush2.bf16.msra.mxu0 0
    %1015 = vmatprep.subr.bf16.mxu0 0
    %1016 = vmatpush2.bf16.msra.mxu0 0
    %1017 = vmatprep.subr.bf16.mxu0 0
    %1018 = vmatpush2.bf16.msra.mxu0 0
    %1019 = vmatprep.subr.bf16.mxu0 0
    %1020 = vmatpush2.bf16.msra.mxu0 0
    %1021 = vmatprep.subr.bf16.mxu0 0
    %1022 = vmatpush2.bf16.msra.mxu0 0
    %1023 = vmatprep.subr.bf16.mxu0 0
    %1024 = vmatpush2.bf16.msra.mxu0 0
    %1025 = vmatprep.mubr.bf16.mxu0 0
    %1026 = vmatmul.mubr.bf16.gmra.mxu0 %v992
    %v1027 = vpop.f32.mrf.mxu0
    %v1028 = vadd.f32 0.0, %v1027
    %v1029 = vpop.f32.mrf.mxu0
    %v1030 = vadd.f32 0.0, %v1029
    %v1031 = vpop.f32.mrf.mxu0
    %v1032 = vpop.f32.mrf.mxu0
    %1033 = vdwg.mxu0
    %1034 = vmatprep.subr.bf16.mxu0 %v252
    %1035 = vmatpush1.bf16.msra.mxu0 %v251
    %1036 = vmatprep.subr.bf16.mxu0 %v248
    %1037 = vmatpush1.bf16.msra.mxu0 %v247
    %1038 = vmatprep.subr.bf16.mxu0 %v244
    %1039 = vmatpush1.bf16.msra.mxu0 %v243
    %1040 = vmatprep.subr.bf16.mxu0 %v240
    %1041 = vmatpush1.bf16.msra.mxu0 %v239
    %1042 = vmatprep.subr.bf16.mxu0 %v236
    %1043 = vmatpush1.bf16.msra.mxu0 %v235
    %1044 = vmatprep.subr.bf16.mxu0 %v232
    %1045 = vmatpush1.bf16.msra.mxu0 %v231
    %1046 = vmatprep.subr.bf16.mxu0 %v228
    %1047 = vmatpush1.bf16.msra.mxu0 %v227
    %1048 = vmatprep.subr.bf16.mxu0 %v224
    %1049 = vmatpush1.bf16.msra.mxu0 %v223
    %1050 = vmatprep.subr.bf16.mxu0 0
    %1051 = vmatpush2.bf16.msra.mxu0 0
    %1052 = vmatprep.subr.bf16.mxu0 0
    %1053 = vmatpush2.bf16.msra.mxu0 0
    %1054 = vmatprep.subr.bf16.mxu0 0
    %1055 = vmatpush2.bf16.msra.mxu0 0
    %1056 = vmatprep.subr.bf16.mxu0 0
    %1057 = vmatpush2.bf16.msra.mxu0 0
    %1058 = vmatprep.subr.bf16.mxu0 0
    %1059 = vmatpush2.bf16.msra.mxu0 0
    %1060 = vmatprep.subr.bf16.mxu0 0
    %1061 = vmatpush2.bf16.msra.mxu0 0
    %1062 = vmatprep.subr.bf16.mxu0 0
    %1063 = vmatpush2.bf16.msra.mxu0 0
    %1064 = vmatprep.subr.bf16.mxu0 0
    %1065 = vmatpush2.bf16.msra.mxu0 0
    %1066 = vmatprep.mubr.bf16.mxu0 0
    %1067 = vmatmul.mubr.bf16.gmra.mxu0 %v992
    %v1068 = vpop.f32.mrf.mxu0
    %v1069 = vadd.f32 0.0, %v1068
    %v1070 = vpop.f32.mrf.mxu0
    %v1071 = vadd.f32 0.0, %v1070
    %v1072 = vpop.f32.mrf.mxu0
    %v1073 = vpop.f32.mrf.mxu0
    %1074 = vdwg.mxu0
    %v1075 = vadd.f32 %v988, %v1028
    %v1076 = vadd.f32 %v989, %v1030
    %v1077 = vadd.f32 %v990, %v1069
    %v1078 = vadd.f32 %v991, %v1071
    %v1079 = vxor.u32 %v1075, 2147483648
    %v1080 = vmul.f32 %v1079, 1.442695
    %v1081 = vpow.pop %v1080
    %v1082 = vadd.f32 %v1081, 1.0
    %v1083 = vrcp.pop %v1082
    %v1084 = vmul.f32 1.0, %v1083
    %v1085 = vxor.u32 %v1076, 2147483648
    %v1086 = vmul.f32 %v1085, 1.442695
    %v1087 = vpow.pop %v1086
    %v1088 = vadd.f32 %v1087, 1.0
    %v1089 = vrcp.pop %v1088
    %v1090 = vmul.f32 1.0, %v1089
    %v1091 = vtanh.pop %v1077
    %v1092 = vxor.u32 %v1078, 2147483648
    %v1093 = vmul.f32 %v1092, 1.442695
    %v1094 = vpow.pop %v1093
    %v1095 = vadd.f32 %v1094, 1.0
    %v1096 = vrcp.pop %v1095
    %v1097 = vmul.f32 1.0, %v1096
    %v1098 = vmul.f32 %v1090, %v923
    %v1099 = vmul.f32 %v1084, %v1091
    %v1100 = vadd.f32 %v1098, %v1099
    %v1101 = vtanh.pop %v1100
    %v1102 = vmul.f32 %v1097, %v1101
    %s1103 = sld [smem:[#allocation3 + $0x5]]
    %s1104 = sshra.s32 %s1103, 3
    %s1105 = sand.u32 %s1103, 7
    %s1106 = sshra.s32 %s1103, 3
    %s1107 = sand.u32 %s1103, 7
    %s1108 = smul.u32 %s1104, 4
    %s1109 = smul.u32 %s1108, 8
    %s1110 = sadd.s32 %s1109, %s1107
    %s1111 = scalar_lea.vmem %s1, %s1110
    %v1112 = vld [vmem:[%s1111] ss:$8 sm:$0xf]
    %s1113 = sld [smem:[#allocation3 + $0x85]]
    %s1114 = sshra.s32 %s1113, 3
    %s1115 = sand.u32 %s1113, 7
    %s1116 = sshra.s32 %s1113, 3
    %s1117 = sand.u32 %s1113, 7
    %s1118 = smul.u32 %s1114, 4
    %s1119 = smul.u32 %s1118, 8
    %s1120 = sadd.s32 %s1119, %s1117
    %s1121 = scalar_lea.vmem %s1, %s1120
    %v1122 = vld [vmem:[%s1121] ss:$8 sm:$0xf]
    %v1124 = vlaneseq
    %v1125 = vshrl.u32 %v1124, 7
    %v1126 = vsub.s32 0, %v1125
    %v1127 = vrot.slane %v1112, %v1126
    %v1128 = vlaneseq
    %v1129 = vshrl.u32 %v1128, 7
    %v1130 = vsub.s32 1, %v1129
    %v1131 = vrot.slane %v1112, %v1130
    %v1132 = vlaneseq
    %v1133 = vshrl.u32 %v1132, 7
    %v1134 = vsub.s32 2, %v1133
    %v1135 = vrot.slane %v1112, %v1134
    %v1136 = vlaneseq
    %v1137 = vshrl.u32 %v1136, 7
    %v1138 = vsub.s32 3, %v1137
    %v1139 = vrot.slane %v1112, %v1138
    %v1145 = vlaneseq
    %v1146 = vshrl.u32 %v1145, 7
    %v1147 = vsub.s32 0, %v1146
    %v1148 = vrot.slane %v1122, %v1147
    %v1149 = vlaneseq
    %v1150 = vshrl.u32 %v1149, 7
    %v1151 = vsub.s32 1, %v1150
    %v1152 = vrot.slane %v1122, %v1151
    %v1153 = vlaneseq
    %v1154 = vshrl.u32 %v1153, 7
    %v1155 = vsub.s32 2, %v1154
    %v1156 = vrot.slane %v1122, %v1155
    %v1157 = vlaneseq
    %v1158 = vshrl.u32 %v1157, 7
    %v1159 = vsub.s32 3, %v1158
    %v1160 = vrot.slane %v1122, %v1159
    %v1165 = vsel %vm120, %v1127, %v1148
    %v1166 = vsel %vm120, %v1131, %v1152
    %v1167 = vsel %vm120, %v1135, %v1156
    %v1168 = vsel %vm120, %v1139, %v1160
    %v1169 = vpack.c.bf16 %v1102, %v1102
    %1170 = vmatprep.subr.bf16.mxu0 %v250
    %1171 = vmatpush1.bf16.msra.mxu0 %v249
    %1172 = vmatprep.subr.bf16.mxu0 %v246
    %1173 = vmatpush1.bf16.msra.mxu0 %v245
    %1174 = vmatprep.subr.bf16.mxu0 %v242
    %1175 = vmatpush1.bf16.msra.mxu0 %v241
    %1176 = vmatprep.subr.bf16.mxu0 %v238
    %1177 = vmatpush1.bf16.msra.mxu0 %v237
    %1178 = vmatprep.subr.bf16.mxu0 %v234
    %1179 = vmatpush1.bf16.msra.mxu0 %v233
    %1180 = vmatprep.subr.bf16.mxu0 %v230
    %1181 = vmatpush1.bf16.msra.mxu0 %v229
    %1182 = vmatprep.subr.bf16.mxu0 %v226
    %1183 = vmatpush1.bf16.msra.mxu0 %v225
    %1184 = vmatprep.subr.bf16.mxu0 %v222
    %1185 = vmatpush1.bf16.msra.mxu0 %v221
    %1186 = vmatprep.subr.bf16.mxu0 0
    %1187 = vmatpush2.bf16.msra.mxu0 0
    %1188 = vmatprep.subr.bf16.mxu0 0
    %1189 = vmatpush2.bf16.msra.mxu0 0
    %1190 = vmatprep.subr.bf16.mxu0 0
    %1191 = vmatpush2.bf16.msra.mxu0 0
    %1192 = vmatprep.subr.bf16.mxu0 0
    %1193 = vmatpush2.bf16.msra.mxu0 0
    %1194 = vmatprep.subr.bf16.mxu0 0
    %1195 = vmatpush2.bf16.msra.mxu0 0
    %1196 = vmatprep.subr.bf16.mxu0 0
    %1197 = vmatpush2.bf16.msra.mxu0 0
    %1198 = vmatprep.subr.bf16.mxu0 0
    %1199 = vmatpush2.bf16.msra.mxu0 0
    %1200 = vmatprep.subr.bf16.mxu0 0
    %1201 = vmatpush2.bf16.msra.mxu0 0
    %1202 = vmatprep.mubr.bf16.mxu0 0
    %1203 = vmatmul.mubr.bf16.gmra.mxu0 %v1169
    %v1204 = vpop.f32.mrf.mxu0
    %v1205 = vadd.f32 0.0, %v1204
    %v1206 = vpop.f32.mrf.mxu0
    %v1207 = vadd.f32 0.0, %v1206
    %v1208 = vpop.f32.mrf.mxu0
    %v1209 = vpop.f32.mrf.mxu0
    %1210 = vdwg.mxu0
    %1211 = vmatprep.subr.bf16.mxu0 %v252
    %1212 = vmatpush1.bf16.msra.mxu0 %v251
    %1213 = vmatprep.subr.bf16.mxu0 %v248
    %1214 = vmatpush1.bf16.msra.mxu0 %v247
    %1215 = vmatprep.subr.bf16.mxu0 %v244
    %1216 = vmatpush1.bf16.msra.mxu0 %v243
    %1217 = vmatprep.subr.bf16.mxu0 %v240
    %1218 = vmatpush1.bf16.msra.mxu0 %v239
    %1219 = vmatprep.subr.bf16.mxu0 %v236
    %1220 = vmatpush1.bf16.msra.mxu0 %v235
    %1221 = vmatprep.subr.bf16.mxu0 %v232
    %1222 = vmatpush1.bf16.msra.mxu0 %v231
    %1223 = vmatprep.subr.bf16.mxu0 %v228
    %1224 = vmatpush1.bf16.msra.mxu0 %v227
    %1225 = vmatprep.subr.bf16.mxu0 %v224
    %1226 = vmatpush1.bf16.msra.mxu0 %v223
    %1227 = vmatprep.subr.bf16.mxu0 0
    %1228 = vmatpush2.bf16.msra.mxu0 0
    %1229 = vmatprep.subr.bf16.mxu0 0
    %1230 = vmatpush2.bf16.msra.mxu0 0
    %1231 = vmatprep.subr.bf16.mxu0 0
    %1232 = vmatpush2.bf16.msra.mxu0 0
    %1233 = vmatprep.subr.bf16.mxu0 0
    %1234 = vmatpush2.bf16.msra.mxu0 0
    %1235 = vmatprep.subr.bf16.mxu0 0
    %1236 = vmatpush2.bf16.msra.mxu0 0
    %1237 = vmatprep.subr.bf16.mxu0 0
    %1238 = vmatpush2.bf16.msra.mxu0 0
    %1239 = vmatprep.subr.bf16.mxu0 0
    %1240 = vmatpush2.bf16.msra.mxu0 0
    %1241 = vmatprep.subr.bf16.mxu0 0
    %1242 = vmatpush2.bf16.msra.mxu0 0
    %1243 = vmatprep.mubr.bf16.mxu0 0
    %1244 = vmatmul.mubr.bf16.gmra.mxu0 %v1169
    %v1245 = vpop.f32.mrf.mxu0
    %v1246 = vadd.f32 0.0, %v1245
    %v1247 = vpop.f32.mrf.mxu0
    %v1248 = vadd.f32 0.0, %v1247
    %v1249 = vpop.f32.mrf.mxu0
    %v1250 = vpop.f32.mrf.mxu0
    %1251 = vdwg.mxu0
    %v1252 = vadd.f32 %v1165, %v1205
    %v1253 = vadd.f32 %v1166, %v1207
    %v1254 = vadd.f32 %v1167, %v1246
    %v1255 = vadd.f32 %v1168, %v1248
    %v1256 = vxor.u32 %v1252, 2147483648
    %v1257 = vmul.f32 %v1256, 1.442695
    %v1258 = vpow.pop %v1257
    %v1259 = vadd.f32 %v1258, 1.0
    %v1260 = vrcp.pop %v1259
    %v1261 = vmul.f32 1.0, %v1260
    %v1262 = vxor.u32 %v1253, 2147483648
    %v1263 = vmul.f32 %v1262, 1.442695
    %v1264 = vpow.pop %v1263
    %v1265 = vadd.f32 %v1264, 1.0
    %v1266 = vrcp.pop %v1265
    %v1267 = vmul.f32 1.0, %v1266
    %v1268 = vtanh.pop %v1254
    %v1269 = vxor.u32 %v1255, 2147483648
    %v1270 = vmul.f32 %v1269, 1.442695
    %v1271 = vpow.pop %v1270
    %v1272 = vadd.f32 %v1271, 1.0
    %v1273 = vrcp.pop %v1272
    %v1274 = vmul.f32 1.0, %v1273
    %v1275 = vmul.f32 %v1267, %v1100
    %v1276 = vmul.f32 %v1261, %v1268
    %v1277 = vadd.f32 %v1275, %v1276
    %v1278 = vtanh.pop %v1277
    %v1279 = vmul.f32 %v1274, %v1278
    %s1280 = sld [smem:[#allocation3 + $0x6]]
    %s1281 = sshra.s32 %s1280, 3
    %s1282 = sand.u32 %s1280, 7
    %s1283 = sshra.s32 %s1280, 3
    %s1284 = sand.u32 %s1280, 7
    %s1285 = smul.u32 %s1281, 4
    %s1286 = smul.u32 %s1285, 8
    %s1287 = sadd.s32 %s1286, %s1284
    %s1288 = scalar_lea.vmem %s1, %s1287
    %v1289 = vld [vmem:[%s1288] ss:$8 sm:$0xf]
    %s1290 = sld [smem:[#allocation3 + $0x86]]
    %s1291 = sshra.s32 %s1290, 3
    %s1292 = sand.u32 %s1290, 7
    %s1293 = sshra.s32 %s1290, 3
    %s1294 = sand.u32 %s1290, 7
    %s1295 = smul.u32 %s1291, 4
    %s1296 = smul.u32 %s1295, 8
    %s1297 = sadd.s32 %s1296, %s1294
    %s1298 = scalar_lea.vmem %s1, %s1297
    %v1299 = vld [vmem:[%s1298] ss:$8 sm:$0xf]
    %v1301 = vlaneseq
    %v1302 = vshrl.u32 %v1301, 7
    %v1303 = vsub.s32 0, %v1302
    %v1304 = vrot.slane %v1289, %v1303
    %v1305 = vlaneseq
    %v1306 = vshrl.u32 %v1305, 7
    %v1307 = vsub.s32 1, %v1306
    %v1308 = vrot.slane %v1289, %v1307
    %v1309 = vlaneseq
    %v1310 = vshrl.u32 %v1309, 7
    %v1311 = vsub.s32 2, %v1310
    %v1312 = vrot.slane %v1289, %v1311
    %v1313 = vlaneseq
    %v1314 = vshrl.u32 %v1313, 7
    %v1315 = vsub.s32 3, %v1314
    %v1316 = vrot.slane %v1289, %v1315
    %v1322 = vlaneseq
    %v1323 = vshrl.u32 %v1322, 7
    %v1324 = vsub.s32 0, %v1323
    %v1325 = vrot.slane %v1299, %v1324
    %v1326 = vlaneseq
    %v1327 = vshrl.u32 %v1326, 7
    %v1328 = vsub.s32 1, %v1327
    %v1329 = vrot.slane %v1299, %v1328
    %v1330 = vlaneseq
    %v1331 = vshrl.u32 %v1330, 7
    %v1332 = vsub.s32 2, %v1331
    %v1333 = vrot.slane %v1299, %v1332
    %v1334 = vlaneseq
    %v1335 = vshrl.u32 %v1334, 7
    %v1336 = vsub.s32 3, %v1335
    %v1337 = vrot.slane %v1299, %v1336
    %v1342 = vsel %vm120, %v1304, %v1325
    %v1343 = vsel %vm120, %v1308, %v1329
    %v1344 = vsel %vm120, %v1312, %v1333
    %v1345 = vsel %vm120, %v1316, %v1337
    %v1346 = vpack.c.bf16 %v1279, %v1279
    %1347 = vmatprep.subr.bf16.mxu0 %v250
    %1348 = vmatpush1.bf16.msra.mxu0 %v249
    %1349 = vmatprep.subr.bf16.mxu0 %v246
    %1350 = vmatpush1.bf16.msra.mxu0 %v245
    %1351 = vmatprep.subr.bf16.mxu0 %v242
    %1352 = vmatpush1.bf16.msra.mxu0 %v241
    %1353 = vmatprep.subr.bf16.mxu0 %v238
    %1354 = vmatpush1.bf16.msra.mxu0 %v237
    %1355 = vmatprep.subr.bf16.mxu0 %v234
    %1356 = vmatpush1.bf16.msra.mxu0 %v233
    %1357 = vmatprep.subr.bf16.mxu0 %v230
    %1358 = vmatpush1.bf16.msra.mxu0 %v229
    %1359 = vmatprep.subr.bf16.mxu0 %v226
    %1360 = vmatpush1.bf16.msra.mxu0 %v225
    %1361 = vmatprep.subr.bf16.mxu0 %v222
    %1362 = vmatpush1.bf16.msra.mxu0 %v221
    %1363 = vmatprep.subr.bf16.mxu0 0
    %1364 = vmatpush2.bf16.msra.mxu0 0
    %1365 = vmatprep.subr.bf16.mxu0 0
    %1366 = vmatpush2.bf16.msra.mxu0 0
    %1367 = vmatprep.subr.bf16.mxu0 0
    %1368 = vmatpush2.bf16.msra.mxu0 0
    %1369 = vmatprep.subr.bf16.mxu0 0
    %1370 = vmatpush2.bf16.msra.mxu0 0
    %1371 = vmatprep.subr.bf16.mxu0 0
    %1372 = vmatpush2.bf16.msra.mxu0 0
    %1373 = vmatprep.subr.bf16.mxu0 0
    %1374 = vmatpush2.bf16.msra.mxu0 0
    %1375 = vmatprep.subr.bf16.mxu0 0
    %1376 = vmatpush2.bf16.msra.mxu0 0
    %1377 = vmatprep.subr.bf16.mxu0 0
    %1378 = vmatpush2.bf16.msra.mxu0 0
    %1379 = vmatprep.mubr.bf16.mxu0 0
    %1380 = vmatmul.mubr.bf16.gmra.mxu0 %v1346
    %v1381 = vpop.f32.mrf.mxu0
    %v1382 = vadd.f32 0.0, %v1381
    %v1383 = vpop.f32.mrf.mxu0
    %v1384 = vadd.f32 0.0, %v1383
    %v1385 = vpop.f32.mrf.mxu0
    %v1386 = vpop.f32.mrf.mxu0
    %1387 = vdwg.mxu0
    %1388 = vmatprep.subr.bf16.mxu0 %v252
    %1389 = vmatpush1.bf16.msra.mxu0 %v251
    %1390 = vmatprep.subr.bf16.mxu0 %v248
    %1391 = vmatpush1.bf16.msra.mxu0 %v247
    %1392 = vmatprep.subr.bf16.mxu0 %v244
    %1393 = vmatpush1.bf16.msra.mxu0 %v243
    %1394 = vmatprep.subr.bf16.mxu0 %v240
    %1395 = vmatpush1.bf16.msra.mxu0 %v239
    %1396 = vmatprep.subr.bf16.mxu0 %v236
    %1397 = vmatpush1.bf16.msra.mxu0 %v235
    %1398 = vmatprep.subr.bf16.mxu0 %v232
    %1399 = vmatpush1.bf16.msra.mxu0 %v231
    %1400 = vmatprep.subr.bf16.mxu0 %v228
    %1401 = vmatpush1.bf16.msra.mxu0 %v227
    %1402 = vmatprep.subr.bf16.mxu0 %v224
    %1403 = vmatpush1.bf16.msra.mxu0 %v223
    %1404 = vmatprep.subr.bf16.mxu0 0
    %1405 = vmatpush2.bf16.msra.mxu0 0
    %1406 = vmatprep.subr.bf16.mxu0 0
    %1407 = vmatpush2.bf16.msra.mxu0 0
    %1408 = vmatprep.subr.bf16.mxu0 0
    %1409 = vmatpush2.bf16.msra.mxu0 0
    %1410 = vmatprep.subr.bf16.mxu0 0
    %1411 = vmatpush2.bf16.msra.mxu0 0
    %1412 = vmatprep.subr.bf16.mxu0 0
    %1413 = vmatpush2.bf16.msra.mxu0 0
    %1414 = vmatprep.subr.bf16.mxu0 0
    %1415 = vmatpush2.bf16.msra.mxu0 0
    %1416 = vmatprep.subr.bf16.mxu0 0
    %1417 = vmatpush2.bf16.msra.mxu0 0
    %1418 = vmatprep.subr.bf16.mxu0 0
    %1419 = vmatpush2.bf16.msra.mxu0 0
    %1420 = vmatprep.mubr.bf16.mxu0 0
    %1421 = vmatmul.mubr.bf16.gmra.mxu0 %v1346
    %v1422 = vpop.f32.mrf.mxu0
    %v1423 = vadd.f32 0.0, %v1422
    %v1424 = vpop.f32.mrf.mxu0
    %v1425 = vadd.f32 0.0, %v1424
    %v1426 = vpop.f32.mrf.mxu0
    %v1427 = vpop.f32.mrf.mxu0
    %1428 = vdwg.mxu0
    %v1429 = vadd.f32 %v1342, %v1382
    %v1430 = vadd.f32 %v1343, %v1384
    %v1431 = vadd.f32 %v1344, %v1423
    %v1432 = vadd.f32 %v1345, %v1425
    %v1433 = vxor.u32 %v1429, 2147483648
    %v1434 = vmul.f32 %v1433, 1.442695
    %v1435 = vpow.pop %v1434
    %v1436 = vadd.f32 %v1435, 1.0
    %v1437 = vrcp.pop %v1436
    %v1438 = vmul.f32 1.0, %v1437
    %v1439 = vxor.u32 %v1430, 2147483648
    %v1440 = vmul.f32 %v1439, 1.442695
    %v1441 = vpow.pop %v1440
    %v1442 = vadd.f32 %v1441, 1.0
    %v1443 = vrcp.pop %v1442
    %v1444 = vmul.f32 1.0, %v1443
    %v1445 = vtanh.pop %v1431
    %v1446 = vxor.u32 %v1432, 2147483648
    %v1447 = vmul.f32 %v1446, 1.442695
    %v1448 = vpow.pop %v1447
    %v1449 = vadd.f32 %v1448, 1.0
    %v1450 = vrcp.pop %v1449
    %v1451 = vmul.f32 1.0, %v1450
    %v1452 = vmul.f32 %v1444, %v1277
    %v1453 = vmul.f32 %v1438, %v1445
    %v1454 = vadd.f32 %v1452, %v1453
    %v1455 = vtanh.pop %v1454
    %v1456 = vmul.f32 %v1451, %v1455
    %s1457 = sld [smem:[#allocation3 + $0x7]]
    %s1458 = sshra.s32 %s1457, 3
    %s1459 = sand.u32 %s1457, 7
    %s1460 = sshra.s32 %s1457, 3
    %s1461 = sand.u32 %s1457, 7
    %s1462 = smul.u32 %s1458, 4
    %s1463 = smul.u32 %s1462, 8
    %s1464 = sadd.s32 %s1463, %s1461
    %s1465 = scalar_lea.vmem %s1, %s1464
    %v1466 = vld [vmem:[%s1465] ss:$8 sm:$0xf]
    %s1467 = sld [smem:[#allocation3 + $0x87]]
    %s1468 = sshra.s32 %s1467, 3
    %s1469 = sand.u32 %s1467, 7
    %s1470 = sshra.s32 %s1467, 3
    %s1471 = sand.u32 %s1467, 7
    %s1472 = smul.u32 %s1468, 4
    %s1473 = smul.u32 %s1472, 8
    %s1474 = sadd.s32 %s1473, %s1471
    %s1475 = scalar_lea.vmem %s1, %s1474
    %v1476 = vld [vmem:[%s1475] ss:$8 sm:$0xf]
    %v1478 = vlaneseq
    %v1479 = vshrl.u32 %v1478, 7
    %v1480 = vsub.s32 0, %v1479
    %v1481 = vrot.slane %v1466, %v1480
    %v1482 = vlaneseq
    %v1483 = vshrl.u32 %v1482, 7
    %v1484 = vsub.s32 1, %v1483
    %v1485 = vrot.slane %v1466, %v1484
    %v1486 = vlaneseq
    %v1487 = vshrl.u32 %v1486, 7
    %v1488 = vsub.s32 2, %v1487
    %v1489 = vrot.slane %v1466, %v1488
    %v1490 = vlaneseq
    %v1491 = vshrl.u32 %v1490, 7
    %v1492 = vsub.s32 3, %v1491
    %v1493 = vrot.slane %v1466, %v1492
    %v1499 = vlaneseq
    %v1500 = vshrl.u32 %v1499, 7
    %v1501 = vsub.s32 0, %v1500
    %v1502 = vrot.slane %v1476, %v1501
    %v1503 = vlaneseq
    %v1504 = vshrl.u32 %v1503, 7
    %v1505 = vsub.s32 1, %v1504
    %v1506 = vrot.slane %v1476, %v1505
    %v1507 = vlaneseq
    %v1508 = vshrl.u32 %v1507, 7
    %v1509 = vsub.s32 2, %v1508
    %v1510 = vrot.slane %v1476, %v1509
    %v1511 = vlaneseq
    %v1512 = vshrl.u32 %v1511, 7
    %v1513 = vsub.s32 3, %v1512
    %v1514 = vrot.slane %v1476, %v1513
    %v1519 = vsel %vm120, %v1481, %v1502
    %v1520 = vsel %vm120, %v1485, %v1506
    %v1521 = vsel %vm120, %v1489, %v1510
    %v1522 = vsel %vm120, %v1493, %v1514
    %v1523 = vpack.c.bf16 %v1456, %v1456
    %1524 = vmatprep.subr.bf16.mxu0 %v250
    %1525 = vmatpush1.bf16.msra.mxu0 %v249
    %1526 = vmatprep.subr.bf16.mxu0 %v246
    %1527 = vmatpush1.bf16.msra.mxu0 %v245
    %1528 = vmatprep.subr.bf16.mxu0 %v242
    %1529 = vmatpush1.bf16.msra.mxu0 %v241
    %1530 = vmatprep.subr.bf16.mxu0 %v238
    %1531 = vmatpush1.bf16.msra.mxu0 %v237
    %1532 = vmatprep.subr.bf16.mxu0 %v234
    %1533 = vmatpush1.bf16.msra.mxu0 %v233
    %1534 = vmatprep.subr.bf16.mxu0 %v230
    %1535 = vmatpush1.bf16.msra.mxu0 %v229
    %1536 = vmatprep.subr.bf16.mxu0 %v226
    %1537 = vmatpush1.bf16.msra.mxu0 %v225
    %1538 = vmatprep.subr.bf16.mxu0 %v222
    %1539 = vmatpush1.bf16.msra.mxu0 %v221
    %1540 = vmatprep.subr.bf16.mxu0 0
    %1541 = vmatpush2.bf16.msra.mxu0 0
    %1542 = vmatprep.subr.bf16.mxu0 0
    %1543 = vmatpush2.bf16.msra.mxu0 0
    %1544 = vmatprep.subr.bf16.mxu0 0
    %1545 = vmatpush2.bf16.msra.mxu0 0
    %1546 = vmatprep.subr.bf16.mxu0 0
    %1547 = vmatpush2.bf16.msra.mxu0 0
    %1548 = vmatprep.subr.bf16.mxu0 0
    %1549 = vmatpush2.bf16.msra.mxu0 0
    %1550 = vmatprep.subr.bf16.mxu0 0
    %1551 = vmatpush2.bf16.msra.mxu0 0
    %1552 = vmatprep.subr.bf16.mxu0 0
    %1553 = vmatpush2.bf16.msra.mxu0 0
    %1554 = vmatprep.subr.bf16.mxu0 0
    %1555 = vmatpush2.bf16.msra.mxu0 0
    %1556 = vmatprep.mubr.bf16.mxu0 0
    %1557 = vmatmul.mubr.bf16.gmra.mxu0 %v1523
    %v1558 = vpop.f32.mrf.mxu0
    %v1559 = vadd.f32 0.0, %v1558
    %v1560 = vpop.f32.mrf.mxu0
    %v1561 = vadd.f32 0.0, %v1560
    %v1562 = vpop.f32.mrf.mxu0
    %v1563 = vpop.f32.mrf.mxu0
    %1564 = vdwg.mxu0
    %1565 = vmatprep.subr.bf16.mxu0 %v252
    %1566 = vmatpush1.bf16.msra.mxu0 %v251
    %1567 = vmatprep.subr.bf16.mxu0 %v248
    %1568 = vmatpush1.bf16.msra.mxu0 %v247
    %1569 = vmatprep.subr.bf16.mxu0 %v244
    %1570 = vmatpush1.bf16.msra.mxu0 %v243
    %1571 = vmatprep.subr.bf16.mxu0 %v240
    %1572 = vmatpush1.bf16.msra.mxu0 %v239
    %1573 = vmatprep.subr.bf16.mxu0 %v236
    %1574 = vmatpush1.bf16.msra.mxu0 %v235
    %1575 = vmatprep.subr.bf16.mxu0 %v232
    %1576 = vmatpush1.bf16.msra.mxu0 %v231
    %1577 = vmatprep.subr.bf16.mxu0 %v228
    %1578 = vmatpush1.bf16.msra.mxu0 %v227
    %1579 = vmatprep.subr.bf16.mxu0 %v224
    %1580 = vmatpush1.bf16.msra.mxu0 %v223
    %1581 = vmatprep.subr.bf16.mxu0 0
    %1582 = vmatpush2.bf16.msra.mxu0 0
    %1583 = vmatprep.subr.bf16.mxu0 0
    %1584 = vmatpush2.bf16.msra.mxu0 0
    %1585 = vmatprep.subr.bf16.mxu0 0
    %1586 = vmatpush2.bf16.msra.mxu0 0
    %1587 = vmatprep.subr.bf16.mxu0 0
    %1588 = vmatpush2.bf16.msra.mxu0 0
    %1589 = vmatprep.subr.bf16.mxu0 0
    %1590 = vmatpush2.bf16.msra.mxu0 0
    %1591 = vmatprep.subr.bf16.mxu0 0
    %1592 = vmatpush2.bf16.msra.mxu0 0
    %1593 = vmatprep.subr.bf16.mxu0 0
    %1594 = vmatpush2.bf16.msra.mxu0 0
    %1595 = vmatprep.subr.bf16.mxu0 0
    %1596 = vmatpush2.bf16.msra.mxu0 0
    %1597 = vmatprep.mubr.bf16.mxu0 0
    %1598 = vmatmul.mubr.bf16.gmra.mxu0 %v1523
    %v1599 = vpop.f32.mrf.mxu0
    %v1600 = vadd.f32 0.0, %v1599
    %v1601 = vpop.f32.mrf.mxu0
    %v1602 = vadd.f32 0.0, %v1601
    %v1603 = vpop.f32.mrf.mxu0
    %v1604 = vpop.f32.mrf.mxu0
    %1605 = vdwg.mxu0
    %v1606 = vadd.f32 %v1519, %v1559
    %v1607 = vadd.f32 %v1520, %v1561
    %v1608 = vadd.f32 %v1521, %v1600
    %v1609 = vadd.f32 %v1522, %v1602
    %v1610 = vxor.u32 %v1606, 2147483648
    %v1611 = vmul.f32 %v1610, 1.442695
    %v1612 = vpow.pop %v1611
    %v1613 = vadd.f32 %v1612, 1.0
    %v1614 = vrcp.pop %v1613
    %v1615 = vmul.f32 1.0, %v1614
    %v1616 = vxor.u32 %v1607, 2147483648
    %v1617 = vmul.f32 %v1616, 1.442695
    %v1618 = vpow.pop %v1617
    %v1619 = vadd.f32 %v1618, 1.0
    %v1620 = vrcp.pop %v1619
    %v1621 = vmul.f32 1.0, %v1620
    %v1622 = vtanh.pop %v1608
    %v1623 = vxor.u32 %v1609, 2147483648
    %v1624 = vmul.f32 %v1623, 1.442695
    %v1625 = vpow.pop %v1624
    %v1626 = vadd.f32 %v1625, 1.0
    %v1627 = vrcp.pop %v1626
    %v1628 = vmul.f32 1.0, %v1627
    %v1629 = vmul.f32 %v1621, %v1454
    %v1630 = vmul.f32 %v1615, %v1622
    %v1631 = vadd.f32 %v1629, %v1630
    %v1632 = vtanh.pop %v1631
    %v1633 = vmul.f32 %v1628, %v1632
    %v1634 = vpack.c.bf16 %v1633, %v1633
    %v1635 = vld [vmem:[%s3] sm:$0xf]
    %v1636 = vld [vmem:[%s3 + $0x4] sm:$0xf]
    %v1637 = vld [vmem:[%s3 + $0x8] sm:$0xf]
    %v1638 = vld [vmem:[%s3 + $0xc] sm:$0xf]
    %v1639 = vld [vmem:[%s3 + $0x10] sm:$0xf]
    %v1640 = vld [vmem:[%s3 + $0x14] sm:$0xf]
    %v1641 = vld [vmem:[%s3 + $0x18] sm:$0xf]
    %v1642 = vld [vmem:[%s3 + $0x1c] sm:$0xf]
    %v1643 = vld [vmem:[%s3 + $0x20] sm:$0xf]
    %v1644 = vld [vmem:[%s3 + $0x24] sm:$0xf]
    %v1645 = vld [vmem:[%s3 + $0x28] sm:$0xf]
    %v1646 = vld [vmem:[%s3 + $0x2c] sm:$0xf]
    %v1647 = vld [vmem:[%s3 + $0x30] sm:$0xf]
    %v1648 = vld [vmem:[%s3 + $0x34] sm:$0xf]
    %v1649 = vld [vmem:[%s3 + $0x38] sm:$0xf]
    %v1650 = vld [vmem:[%s3 + $0x3c] sm:$0xf]
    %v1651 = vld [vmem:[%s4] sm:$0x1]
    %v1653 = vlaneseq
    %v1654 = vshrl.u32 %v1653, 7
    %v1655 = vsub.s32 0, %v1654
    %v1656 = vrot.slane %v1651, %v1655
    %v1674 = vunpack.c.l.b16 %v1635
    %v1675 = vunpack.c.l.b16 %v1636
    %v1676 = vunpack.c.l.b16 %v1637
    %v1677 = vunpack.c.l.b16 %v1638
    %v1678 = vunpack.c.l.b16 %v1639
    %v1679 = vunpack.c.l.b16 %v1640
    %v1680 = vunpack.c.l.b16 %v1641
    %v1681 = vunpack.c.l.b16 %v1642
    %v1682 = vunpack.c.l.b16 %v1643
    %v1683 = vunpack.c.l.b16 %v1644
    %v1684 = vunpack.c.l.b16 %v1645
    %v1685 = vunpack.c.l.b16 %v1646
    %v1686 = vunpack.c.l.b16 %v1647
    %v1687 = vunpack.c.l.b16 %v1648
    %v1688 = vunpack.c.l.b16 %v1649
    %v1689 = vunpack.c.l.b16 %v1650
    %v1690 = vpack.c.b16 %v1675, %v1674
    %v1691 = vpack.c.b16 %v1677, %v1676
    %v1692 = vpack.c.b16 %v1679, %v1678
    %v1693 = vpack.c.b16 %v1681, %v1680
    %v1694 = vpack.c.b16 %v1683, %v1682
    %v1695 = vpack.c.b16 %v1685, %v1684
    %v1696 = vpack.c.b16 %v1687, %v1686
    %v1697 = vpack.c.b16 %v1689, %v1688
    %1706 = vmatprep.subr.bf16.mxu0 0
    %1707 = vmatpush1.bf16.msra.mxu0 %v1697
    %1708 = vmatprep.subr.bf16.mxu0 0
    %1709 = vmatpush1.bf16.msra.mxu0 %v1696
    %1710 = vmatprep.subr.bf16.mxu0 0
    %1711 = vmatpush1.bf16.msra.mxu0 %v1695
    %1712 = vmatprep.subr.bf16.mxu0 0
    %1713 = vmatpush1.bf16.msra.mxu0 %v1694
    %1714 = vmatprep.subr.bf16.mxu0 0
    %1715 = vmatpush1.bf16.msra.mxu0 %v1693
    %1716 = vmatprep.subr.bf16.mxu0 0
    %1717 = vmatpush1.bf16.msra.mxu0 %v1692
    %1718 = vmatprep.subr.bf16.mxu0 0
    %1719 = vmatpush1.bf16.msra.mxu0 %v1691
    %1720 = vmatprep.subr.bf16.mxu0 0
    %1721 = vmatpush1.bf16.msra.mxu0 %v1690
    %1722 = vmatprep.subr.bf16.mxu0 0
    %1723 = vmatpush2.bf16.msra.mxu0 0
    %1724 = vmatprep.subr.bf16.mxu0 0
    %1725 = vmatpush2.bf16.msra.mxu0 0
    %1726 = vmatprep.subr.bf16.mxu0 0
    %1727 = vmatpush2.bf16.msra.mxu0 0
    %1728 = vmatprep.subr.bf16.mxu0 0
    %1729 = vmatpush2.bf16.msra.mxu0 0
    %1730 = vmatprep.subr.bf16.mxu0 0
    %1731 = vmatpush2.bf16.msra.mxu0 0
    %1732 = vmatprep.subr.bf16.mxu0 0
    %1733 = vmatpush2.bf16.msra.mxu0 0
    %1734 = vmatprep.subr.bf16.mxu0 0
    %1735 = vmatpush2.bf16.msra.mxu0 0
    %1736 = vmatprep.subr.bf16.mxu0 0
    %1737 = vmatpush2.bf16.msra.mxu0 0
    %1738 = vmatprep.mubr.bf16.mxu0 0
    %1739 = vmatmul.mubr.bf16.gmra.mxu0 %v1634
    %v1740 = vpop.f32.mrf.mxu0
    %v1741 = vadd.f32 %v1656, %v1740
    %v1742 = vpop.f32.mrf.mxu0
    %v1743 = vpop.f32.mrf.mxu0
    %v1744 = vpop.f32.mrf.mxu0
    %1745 = vdwg.mxu0
    %vm1746 = vcmask 58368
    %v1747 = vsel %vm1746, %v1741, -inf
    %1748 = vmax.xlane.f32.xlu0 %v1747
    %v1749 = vpop.xlane.xlu0 %1748
    %v1750 = vsub.f32 %v1741, %v1749
    %v1751 = vmul.f32 %v1750, 1.442695
    %v1752 = vpow.pop %v1751
    %v1753 = vsel %vm1746, %v1752, 0.0
    %1754 = vadd.xlane.f32.xlu0 %v1753
    %v1755 = vpop.xlane.xlu0 %1754
    %v1756 = vrcp.pop %v1755
    %v1757 = vmul.f32 %v1752, %v1756
    %1758 = vst.msk [vmem:[#allocation4] sm:$0x3] %vm1746, %v1757
    // Predicated region
    $region18: #{torch_model_forward.1} parent=1 // pred_check
      _
    $region19: #{torch_model_forward.1} parent=1 // pred_check_branch
      %1760 = sbr.rel (0) target = $region21
    $region20: #{torch_model_forward.1} parent=1 // pred_region
      %s1762 = ssub.s32 32, 32
      %1763 = vsyncadd [#allocation5], %s1762
      %s1765 = sshll.u32 [#allocation4], 4
      %s1766 = int_to_ptr.vmem [resolvable:$true] %s1765
      %1768 = dma.vmem_to_hbm [thread:$0]  %s1766, 32, %s5, [#allocation5]
    $region21: #{torch_model_forward.1} parent=1 // pred_fallthru
      _
    // Predicated region
    $region22: #{torch_model_forward.1} parent=1 // pred_check
      _
    $region23: #{torch_model_forward.1} parent=1 // pred_check_branch
      %1770 = sbr.rel (0) target = $region25
    $region24: #{torch_model_forward.1} parent=1 // pred_region
      %1771 = dma.done [#allocation5], 32
    $region25: #{torch_model_forward.1} parent=1 // pred_fallthru
      _
    %1772 = vsyncpa [#allocation5], 1

</llo_original>
